<compile_context>
chip_gen: v7x
topology: tpu7x:2x2x1
jax: 0.10.0
libtpu: 0.0.40
codegen_flags: <defaults>
</compile_context>

<pallas_src>
import functools

import numpy as np
import jax
import jax.numpy as jnp
from jax.experimental import pallas as pl
from jax.experimental.pallas import tpu as pltpu


_TAN_PI_8 = 0.4142135623730951
_PI = 3.141592653589793
_PI_2 = 1.5707963267948966
_PI_4 = 0.7853981633974483


def _recip(x):
  """EUP approx reciprocal + one Newton step (~f32 accuracy, off the VALU)."""
  r = pl.reciprocal(x, approx=True)
  return r * (2.0 - x * r)


def _atan2(y, x):
  """Quadrant-aware atan2 from elementwise primitives (Cephes-style poly).

  The two range reductions are folded into a single reciprocal:
    not big: a = mn/mx
    big    : a = (mn/mx - 1)/(mn/mx + 1) = (mn - mx)/(mn + mx)
  """
  ax = jnp.abs(x)
  ay = jnp.abs(y)
  mx = jnp.maximum(ax, ay)
  mn = jnp.minimum(ax, ay)

  big = mn > _TAN_PI_8 * mx            # (mn/mx) > tan(pi/8), no divide needed
  num = jnp.where(big, mn - mx, mn)
  den = jnp.where(big, mn + mx, mx)
  den_ok = den > 0.0
  a_red = num * _recip(jnp.where(den_ok, den, 1.0))
  a_red = jnp.where(den_ok, a_red, 0.0)

  z = a_red * a_red
  p = ((((8.05374449538e-2 * z - 1.38776856032e-1) * z
         + 1.99777106478e-1) * z
        - 3.33329491539e-1) * z * a_red + a_red)
  r = jnp.where(big, p + _PI_4, p)
  r = jnp.where(ay > ax, _PI_2 - r, r)   # atan(ay/ax) = pi/2 - atan(ax/ay)
  r = jnp.where(x < 0.0, _PI - r, r)     # quadrants II / III
  r = jnp.where(y < 0.0, -r, r)          # lower half plane
  return r


def _pha_loss_kernel(x_ref, y_ref, fw_ref, fh_ref, out_ref, acc_ref,
                     *, nrows, wf_pad, rows_mult8):
  ii = pl.program_id(1)

  @pl.when(ii == 0)
  def _():
    acc_ref[...] = jnp.zeros_like(acc_ref)

  fw = fw_ref[...]   # (W, 2*Wf_pad)        fused [cos | sin] W-axis DFT
  fh = fh_ref[...]   # (2*TB*H, TB*H)       fused [blkdiag cos ; blkdiag sin]

  def phase(img):    # img: (TB*H, W) — TB images stacked along rows
    # One MXU call: rfft along W (real & imag halves side by side).
    a = jnp.dot(img, fw, preferred_element_type=jnp.float32)   # (nrows, 2*wfp)
    # One MXU call: full DFT along H for both halves; result is
    #   [[Fhr@ar, Fhr@ai], [Fhi@ar, Fhi@ai]]  stacked (2*nrows, 2*wfp).
    t = jnp.dot(fh, a, preferred_element_type=jnp.float32)
    rr = t[:nrows, :wf_pad] - t[nrows:, wf_pad:]               # Re(rfft2)
    ri = t[:nrows, wf_pad:] + t[nrows:, :wf_pad]               # Im(rfft2)
    return _atan2(ri, rr)                                      # (nrows, wfp)

  d = jnp.abs(phase(x_ref[0]) - phase(y_ref[0]))               # (nrows, wfp)

  # Lane-parallel accumulation: layout-preserving sublane-group split + pure
  # vreg adds; no cross-lane reduce inside the grid loop.
  if rows_mult8:
    acc_ref[...] += jnp.sum(d.reshape(nrows // 8, 8, wf_pad), axis=0)
  else:
    # Fallback for odd row counts: single XLU sublane reduce per step.
    acc_ref[0:1, :] = acc_ref[0:1, :] + jnp.sum(d, axis=0, keepdims=True)

  @pl.when(ii == pl.num_programs(1) - 1)
  def _():
    out_ref[0] = acc_ref[...]


def _pick_image_block(b, h, target_rows=256):
  """Largest divisor of b with tb*h <= max(target_rows, h); prefer tb*h % 8 == 0."""
  best_any, best_m8 = 1, 0
  for cand in range(1, b + 1):
    if b % cand:
      continue
    if cand * h <= max(target_rows, h):
      best_any = cand
      if (cand * h) % 8 == 0:
        best_m8 = cand
  return best_m8 if best_m8 else best_any


def pha_loss(x, y):
  """Mean |angle(rfft2(x)) - angle(rfft2(y))| for NCHW float inputs."""
  assert x.shape == y.shape and x.ndim == 4
  n, c, h, w = x.shape
  b = n * c
  wf = w // 2 + 1                            # rfft keeps W//2 + 1 frequencies
  wf_pad = ((wf + 127) // 128) * 128         # lane-dense padding

  tb = _pick_image_block(b, h)
  nrows = tb * h
  rows_mult8 = (nrows % 8 == 0)
  num_blocks = b // tb
  ncore = 2 if (num_blocks % 2 == 0 and num_blocks >= 2) else 1
  inner = num_blocks // ncore

  xb = x.reshape(num_blocks, nrows, w).astype(jnp.float32)
  yb = y.reshape(num_blocks, nrows, w).astype(jnp.float32)

  # DFT twiddles (host-side, float64 -> float32). (k*n) is reduced mod N
  # before the angle so twiddles stay accurate for large H/W.
  jw = np.arange(w)[:, None]
  kw = np.arange(wf)[None, :]
  ang_w = (-2.0 * np.pi / w) * ((jw * kw) % w)
  fw_np = np.zeros((w, 2 * wf_pad), np.float32)
  fw_np[:, :wf] = np.cos(ang_w)
  fw_np[:, wf_pad:wf_pad + wf] = np.sin(ang_w)
  # Zero-padded frequency columns give rr = ri = 0 for both inputs, so
  # atan2 returns 0 for both and they contribute nothing to the L1 sum.

  kh = np.arange(h)[:, None]
  jh = np.arange(h)[None, :]
  ang_h = (-2.0 * np.pi / h) * ((kh * jh) % h)
  fh_r = np.cos(ang_h).astype(np.float32)    # (H, H)
  fh_i = np.sin(ang_h).astype(np.float32)
  fh_np = np.zeros((2 * nrows, nrows), np.float32)
  for t in range(tb):                        # block-diagonal I_TB (x) Fh, stacked
    fh_np[t * h:(t + 1) * h, t * h:(t + 1) * h] = fh_r
    fh_np[nrows + t * h:nrows + (t + 1) * h, t * h:(t + 1) * h] = fh_i

  fw_c = jnp.asarray(fw_np)
  fh_c = jnp.asarray(fh_np)

  inv_count = 1.0 / float(b * h * wf)        # L1Loss 'mean' over true rfft grid

  flops = int(num_blocks * 8 * wf_pad * nrows * (w + 2 * nrows))
  bytes_accessed = int(2 * b * h * w * 4
                       + (2 * w * wf_pad + 2 * nrows * nrows) * 4
                       + ncore * 8 * wf_pad * 4)
  cost = pl.CostEstimate(flops=flops,
                         transcendentals=int(2 * num_blocks * nrows * wf_pad),
                         bytes_accessed=bytes_accessed)

  partials = pl.pallas_call(
      functools.partial(_pha_loss_kernel, nrows=nrows, wf_pad=wf_pad,
                        rows_mult8=rows_mult8),
      out_shape=jax.ShapeDtypeStruct((ncore, 8, wf_pad), jnp.float32),
      grid_spec=pltpu.PrefetchScalarGridSpec(
          num_scalar_prefetch=0,
          grid=(ncore, inner),
          in_specs=[
              pl.BlockSpec((1, nrows, w), lambda p, i: (p * inner + i, 0, 0)),
              pl.BlockSpec((1, nrows, w), lambda p, i: (p * inner + i, 0, 0)),
              pl.BlockSpec((w, 2 * wf_pad), lambda p, i: (0, 0)),      # Fw
              pl.BlockSpec((2 * nrows, nrows), lambda p, i: (0, 0)),   # Fh
          ],
          out_specs=pl.BlockSpec((1, 8, wf_pad), lambda p, i: (p, 0, 0)),
          scratch_shapes=[pltpu.VMEM((8, wf_pad), jnp.float32)],
      ),
      compiler_params=pltpu.CompilerParams(
          dimension_semantics=("parallel", "arbitrary")),
      cost_estimate=cost,
  )(xb, yb, fw_c, fh_c)

  # Per-core lane-parallel partials -> final scalar (tiny reduce, done in XLA).
  return jnp.sum(partials) * inv_count


if __name__ == "__main__":
  key = jax.random.PRNGKey(0)
  kx, ky = jax.random.split(key)
  # Small NCHW inputs consistent with the module's forward.
  x = jax.random.normal(kx, (2, 4, 16, 16), dtype=jnp.float32)
  y = jax.random.normal(ky, (2, 4, 16, 16), dtype=jnp.float32)

  loss = pha_loss(x, y)
  jax.block_until_ready(loss)
  print("KERNEL_OK")
</pallas_src>

<mosaic_0001>
module attributes {stable_mosaic.version = 11 : i64} {
  func.func @_pha_loss_kernel(%arg0: i32, %arg1: i32, %arg2: memref<1x128x16xf32, #tpu.memory_space<vmem>>, %arg3: memref<1x128x16xf32, #tpu.memory_space<vmem>>, %arg4: memref<16x256xf32, #tpu.memory_space<vmem>>, %arg5: memref<256x128xf32, #tpu.memory_space<vmem>>, %arg6: memref<1x8x128xf32, #tpu.memory_space<vmem>>, %arg7: memref<8x128xf32, #tpu.memory_space<vmem>>) attributes {dimension_semantics = [#tpu.dimension_semantics<parallel>, #tpu.dimension_semantics<arbitrary>], iteration_bounds = array<i64: 1, 1>, scalar_prefetch = 0 : i64, scratch_operands = 1 : i64, tpu.core_type = #tpu.core_type<tc>, window_params = [{transform_indices = @transform_0, window_bounds = array<i64: 1, 128, 16>}, {transform_indices = @transform_1, window_bounds = array<i64: 1, 128, 16>}, {pipeline_mode = #tpu.pipeline_mode<synchronous>, transform_indices = @transform_2, window_bounds = array<i64: 16, 256>}, {pipeline_mode = #tpu.pipeline_mode<synchronous>, transform_indices = @transform_3, window_bounds = array<i64: 256, 128>}, {transform_indices = @transform_4, window_bounds = array<i64: 1, 8, 128>}]} {
    %c0_i32 = arith.constant 0 : i32
    %0 = arith.cmpi eq, %arg1, %c0_i32 : i32
    %1 = arith.extui %0 : i1 to i32
    %c0_i32_0 = arith.constant 0 : i32
    %2 = arith.cmpi ne, %1, %c0_i32_0 : i32
    scf.if %2 {
      %cst_50 = arith.constant 0.000000e+00 : f32
      %143 = vector.broadcast %cst_50 : f32 to vector<8x128xf32>
      %c0_51 = arith.constant 0 : index
      %c0_52 = arith.constant 0 : index
      %144 = vector.load %arg7[%c0_51, %c0_52] : memref<8x128xf32, #tpu.memory_space<vmem>>, vector<8x128xf32>
      tpu.vector_store %arg7[%c0_51, %c0_52], %143 {strides = array<i32>} : memref<8x128xf32, #tpu.memory_space<vmem>>, vector<8x128xf32>,
    } else {
    }
    %c0 = arith.constant 0 : index
    %c0_1 = arith.constant 0 : index
    %3 = vector.load %arg4[%c0, %c0_1] : memref<16x256xf32, #tpu.memory_space<vmem>>, vector<16x256xf32>
    %c0_2 = arith.constant 0 : index
    %c0_3 = arith.constant 0 : index
    %4 = vector.load %arg5[%c0_2, %c0_3] : memref<256x128xf32, #tpu.memory_space<vmem>>, vector<256x128xf32>
    %c0_4 = arith.constant 0 : index
    %c0_5 = arith.constant 0 : index
    %c0_6 = arith.constant 0 : index
    %5 = vector.load %arg2[%c0_4, %c0_5, %c0_6] : memref<1x128x16xf32, #tpu.memory_space<vmem>>, vector<1x128x16xf32>
    %6 = vector.shape_cast %5 : vector<1x128x16xf32> to vector<128x16xf32>
    %cst = arith.constant dense<0.000000e+00> : vector<128x256xf32>
    %7 = tpu.matmul %6, %3, %cst {dimension_numbers = #tpu.dot_dimension_numbers<[1], [0], [0], [1], [0, 0, 1, 1], [], []>} : vector<128x16xf32>, vector<16x256xf32>, vector<128x256xf32> -> vector<128x256xf32>
    %cst_7 = arith.constant dense<0.000000e+00> : vector<256x256xf32>
    %8 = tpu.matmul %4, %7, %cst_7 {dimension_numbers = #tpu.dot_dimension_numbers<[1], [0], [0], [1], [0, 0, 1, 1], [], []>} : vector<256x128xf32>, vector<128x256xf32>, vector<256x256xf32> -> vector<256x256xf32>
    %9 = vector.extract_strided_slice %8 {offsets = [0, 0], sizes = [128, 128], strides = [1, 1]} : vector<256x256xf32> to vector<128x128xf32>
    %10 = vector.extract_strided_slice %8 {offsets = [128, 128], sizes = [128, 128], strides = [1, 1]} : vector<256x256xf32> to vector<128x128xf32>
    %11 = arith.subf %9, %10 : vector<128x128xf32>
    %12 = vector.extract_strided_slice %8 {offsets = [0, 128], sizes = [128, 128], strides = [1, 1]} : vector<256x256xf32> to vector<128x128xf32>
    %13 = vector.extract_strided_slice %8 {offsets = [128, 0], sizes = [128, 128], strides = [1, 1]} : vector<256x256xf32> to vector<128x128xf32>
    %14 = arith.addf %12, %13 : vector<128x128xf32>
    %15 = math.absf %11 : vector<128x128xf32>
    %16 = math.absf %14 : vector<128x128xf32>
    %17 = arith.maximumf %15, %16 : vector<128x128xf32>
    %18 = arith.minimumf %15, %16 : vector<128x128xf32>
    %cst_8 = arith.constant 0.414213568 : f32
    %19 = vector.broadcast %cst_8 : f32 to vector<128x128xf32>
    %20 = arith.mulf %19, %17 : vector<128x128xf32>
    %21 = arith.cmpf ogt, %18, %20 : vector<128x128xf32>
    %22 = arith.subf %18, %17 : vector<128x128xf32>
    %23 = arith.select %21, %22, %18 : vector<128x128xi1>, vector<128x128xf32>
    %24 = arith.addf %18, %17 : vector<128x128xf32>
    %25 = arith.select %21, %24, %17 : vector<128x128xi1>, vector<128x128xf32>
    %cst_9 = arith.constant 0.000000e+00 : f32
    %26 = vector.broadcast %cst_9 : f32 to vector<128x128xf32>
    %27 = arith.cmpf ogt, %25, %26 : vector<128x128xf32>
    %cst_10 = arith.constant 1.000000e+00 : f32
    %28 = vector.broadcast %cst_10 : f32 to vector<128x128xf32>
    %29 = arith.select %27, %25, %28 : vector<128x128xi1>, vector<128x128xf32>
    %30 = tpu.reciprocal %29 {approx = true} : vector<128x128xf32> -> vector<128x128xf32>
    %31 = arith.mulf %29, %30 : vector<128x128xf32>
    %cst_11 = arith.constant 2.000000e+00 : f32
    %32 = vector.broadcast %cst_11 : f32 to vector<128x128xf32>
    %33 = arith.subf %32, %31 : vector<128x128xf32>
    %34 = arith.mulf %30, %33 : vector<128x128xf32>
    %35 = arith.mulf %23, %34 : vector<128x128xf32>
    %cst_12 = arith.constant 0.000000e+00 : f32
    %36 = vector.broadcast %cst_12 : f32 to vector<128x128xf32>
    %37 = arith.select %27, %35, %36 : vector<128x128xi1>, vector<128x128xf32>
    %38 = arith.mulf %37, %37 : vector<128x128xf32>
    %cst_13 = arith.constant 0.0805374458 : f32
    %39 = vector.broadcast %cst_13 : f32 to vector<128x128xf32>
    %40 = arith.mulf %39, %38 : vector<128x128xf32>
    %cst_14 = arith.constant 0.138776854 : f32
    %41 = vector.broadcast %cst_14 : f32 to vector<128x128xf32>
    %42 = arith.subf %40, %41 : vector<128x128xf32>
    %43 = arith.mulf %42, %38 : vector<128x128xf32>
    %cst_15 = arith.constant 0.199777111 : f32
    %44 = vector.broadcast %cst_15 : f32 to vector<128x128xf32>
    %45 = arith.addf %43, %44 : vector<128x128xf32>
    %46 = arith.mulf %45, %38 : vector<128x128xf32>
    %cst_16 = arith.constant 0.333329499 : f32
    %47 = vector.broadcast %cst_16 : f32 to vector<128x128xf32>
    %48 = arith.subf %46, %47 : vector<128x128xf32>
    %49 = arith.mulf %48, %38 : vector<128x128xf32>
    %50 = arith.mulf %49, %37 : vector<128x128xf32>
    %51 = arith.addf %50, %37 : vector<128x128xf32>
    %cst_17 = arith.constant 0.785398185 : f32
    %52 = vector.broadcast %cst_17 : f32 to vector<128x128xf32>
    %53 = arith.addf %51, %52 : vector<128x128xf32>
    %54 = arith.select %21, %53, %51 : vector<128x128xi1>, vector<128x128xf32>
    %55 = arith.cmpf ogt, %16, %15 : vector<128x128xf32>
    %cst_18 = arith.constant 1.57079637 : f32
    %56 = vector.broadcast %cst_18 : f32 to vector<128x128xf32>
    %57 = arith.subf %56, %54 : vector<128x128xf32>
    %58 = arith.select %55, %57, %54 : vector<128x128xi1>, vector<128x128xf32>
    %cst_19 = arith.constant 0.000000e+00 : f32
    %59 = vector.broadcast %cst_19 : f32 to vector<128x128xf32>
    %60 = arith.cmpf olt, %11, %59 : vector<128x128xf32>
    %cst_20 = arith.constant 3.14159274 : f32
    %61 = vector.broadcast %cst_20 : f32 to vector<128x128xf32>
    %62 = arith.subf %61, %58 : vector<128x128xf32>
    %63 = arith.select %60, %62, %58 : vector<128x128xi1>, vector<128x128xf32>
    %cst_21 = arith.constant 0.000000e+00 : f32
    %64 = vector.broadcast %cst_21 : f32 to vector<128x128xf32>
    %65 = arith.cmpf olt, %14, %64 : vector<128x128xf32>
    %cst_22 = arith.constant 0.000000e+00 : f32
    %66 = vector.broadcast %cst_22 : f32 to vector<128x128xf32>
    %67 = arith.subf %66, %63 : vector<128x128xf32>
    %68 = arith.select %65, %67, %63 : vector<128x128xi1>, vector<128x128xf32>
    %c0_23 = arith.constant 0 : index
    %c0_24 = arith.constant 0 : index
    %c0_25 = arith.constant 0 : index
    %69 = vector.load %arg3[%c0_23, %c0_24, %c0_25] : memref<1x128x16xf32, #tpu.memory_space<vmem>>, vector<1x128x16xf32>
    %70 = vector.shape_cast %69 : vector<1x128x16xf32> to vector<128x16xf32>
    %cst_26 = arith.constant dense<0.000000e+00> : vector<128x256xf32>
    %71 = tpu.matmul %70, %3, %cst_26 {dimension_numbers = #tpu.dot_dimension_numbers<[1], [0], [0], [1], [0, 0, 1, 1], [], []>} : vector<128x16xf32>, vector<16x256xf32>, vector<128x256xf32> -> vector<128x256xf32>
    %cst_27 = arith.constant dense<0.000000e+00> : vector<256x256xf32>
    %72 = tpu.matmul %4, %71, %cst_27 {dimension_numbers = #tpu.dot_dimension_numbers<[1], [0], [0], [1], [0, 0, 1, 1], [], []>} : vector<256x128xf32>, vector<128x256xf32>, vector<256x256xf32> -> vector<256x256xf32>
    %73 = vector.extract_strided_slice %72 {offsets = [0, 0], sizes = [128, 128], strides = [1, 1]} : vector<256x256xf32> to vector<128x128xf32>
    %74 = vector.extract_strided_slice %72 {offsets = [128, 128], sizes = [128, 128], strides = [1, 1]} : vector<256x256xf32> to vector<128x128xf32>
    %75 = arith.subf %73, %74 : vector<128x128xf32>
    %76 = vector.extract_strided_slice %72 {offsets = [0, 128], sizes = [128, 128], strides = [1, 1]} : vector<256x256xf32> to vector<128x128xf32>
    %77 = vector.extract_strided_slice %72 {offsets = [128, 0], sizes = [128, 128], strides = [1, 1]} : vector<256x256xf32> to vector<128x128xf32>
    %78 = arith.addf %76, %77 : vector<128x128xf32>
    %79 = math.absf %75 : vector<128x128xf32>
    %80 = math.absf %78 : vector<128x128xf32>
    %81 = arith.maximumf %79, %80 : vector<128x128xf32>
    %82 = arith.minimumf %79, %80 : vector<128x128xf32>
    %cst_28 = arith.constant 0.414213568 : f32
    %83 = vector.broadcast %cst_28 : f32 to vector<128x128xf32>
    %84 = arith.mulf %83, %81 : vector<128x128xf32>
    %85 = arith.cmpf ogt, %82, %84 : vector<128x128xf32>
    %86 = arith.subf %82, %81 : vector<128x128xf32>
    %87 = arith.select %85, %86, %82 : vector<128x128xi1>, vector<128x128xf32>
    %88 = arith.addf %82, %81 : vector<128x128xf32>
    %89 = arith.select %85, %88, %81 : vector<128x128xi1>, vector<128x128xf32>
    %cst_29 = arith.constant 0.000000e+00 : f32
    %90 = vector.broadcast %cst_29 : f32 to vector<128x128xf32>
    %91 = arith.cmpf ogt, %89, %90 : vector<128x128xf32>
    %cst_30 = arith.constant 1.000000e+00 : f32
    %92 = vector.broadcast %cst_30 : f32 to vector<128x128xf32>
    %93 = arith.select %91, %89, %92 : vector<128x128xi1>, vector<128x128xf32>
    %94 = tpu.reciprocal %93 {approx = true} : vector<128x128xf32> -> vector<128x128xf32>
    %95 = arith.mulf %93, %94 : vector<128x128xf32>
    %cst_31 = arith.constant 2.000000e+00 : f32
    %96 = vector.broadcast %cst_31 : f32 to vector<128x128xf32>
    %97 = arith.subf %96, %95 : vector<128x128xf32>
    %98 = arith.mulf %94, %97 : vector<128x128xf32>
    %99 = arith.mulf %87, %98 : vector<128x128xf32>
    %cst_32 = arith.constant 0.000000e+00 : f32
    %100 = vector.broadcast %cst_32 : f32 to vector<128x128xf32>
    %101 = arith.select %91, %99, %100 : vector<128x128xi1>, vector<128x128xf32>
    %102 = arith.mulf %101, %101 : vector<128x128xf32>
    %cst_33 = arith.constant 0.0805374458 : f32
    %103 = vector.broadcast %cst_33 : f32 to vector<128x128xf32>
    %104 = arith.mulf %103, %102 : vector<128x128xf32>
    %cst_34 = arith.constant 0.138776854 : f32
    %105 = vector.broadcast %cst_34 : f32 to vector<128x128xf32>
    %106 = arith.subf %104, %105 : vector<128x128xf32>
    %107 = arith.mulf %106, %102 : vector<128x128xf32>
    %cst_35 = arith.constant 0.199777111 : f32
    %108 = vector.broadcast %cst_35 : f32 to vector<128x128xf32>
    %109 = arith.addf %107, %108 : vector<128x128xf32>
    %110 = arith.mulf %109, %102 : vector<128x128xf32>
    %cst_36 = arith.constant 0.333329499 : f32
    %111 = vector.broadcast %cst_36 : f32 to vector<128x128xf32>
    %112 = arith.subf %110, %111 : vector<128x128xf32>
    %113 = arith.mulf %112, %102 : vector<128x128xf32>
    %114 = arith.mulf %113, %101 : vector<128x128xf32>
    %115 = arith.addf %114, %101 : vector<128x128xf32>
    %cst_37 = arith.constant 0.785398185 : f32
    %116 = vector.broadcast %cst_37 : f32 to vector<128x128xf32>
    %117 = arith.addf %115, %116 : vector<128x128xf32>
    %118 = arith.select %85, %117, %115 : vector<128x128xi1>, vector<128x128xf32>
    %119 = arith.cmpf ogt, %80, %79 : vector<128x128xf32>
    %cst_38 = arith.constant 1.57079637 : f32
    %120 = vector.broadcast %cst_38 : f32 to vector<128x128xf32>
    %121 = arith.subf %120, %118 : vector<128x128xf32>
    %122 = arith.select %119, %121, %118 : vector<128x128xi1>, vector<128x128xf32>
    %cst_39 = arith.constant 0.000000e+00 : f32
    %123 = vector.broadcast %cst_39 : f32 to vector<128x128xf32>
    %124 = arith.cmpf olt, %75, %123 : vector<128x128xf32>
    %cst_40 = arith.constant 3.14159274 : f32
    %125 = vector.broadcast %cst_40 : f32 to vector<128x128xf32>
    %126 = arith.subf %125, %122 : vector<128x128xf32>
    %127 = arith.select %124, %126, %122 : vector<128x128xi1>, vector<128x128xf32>
    %cst_41 = arith.constant 0.000000e+00 : f32
    %128 = vector.broadcast %cst_41 : f32 to vector<128x128xf32>
    %129 = arith.cmpf olt, %78, %128 : vector<128x128xf32>
    %cst_42 = arith.constant 0.000000e+00 : f32
    %130 = vector.broadcast %cst_42 : f32 to vector<128x128xf32>
    %131 = arith.subf %130, %127 : vector<128x128xf32>
    %132 = arith.select %129, %131, %127 : vector<128x128xi1>, vector<128x128xf32>
    %133 = arith.subf %68, %132 : vector<128x128xf32>
    %134 = math.absf %133 : vector<128x128xf32>
    %c0_43 = arith.constant 0 : index
    %c0_44 = arith.constant 0 : index
    %135 = vector.load %arg7[%c0_43, %c0_44] : memref<8x128xf32, #tpu.memory_space<vmem>>, vector<8x128xf32>
    %136 = vector.shape_cast %134 : vector<128x128xf32> to vector<16x8x128xf32>
    %cst_45 = arith.constant dense<0.000000e+00> : vector<8x128xf32>
    %137 = vector.multi_reduction <add>, %136, %cst_45 [0] : vector<16x8x128xf32> to vector<8x128xf32>
    %138 = arith.addf %135, %137 : vector<8x128xf32>
    %c0_46 = arith.constant 0 : index
    %c0_47 = arith.constant 0 : index
    %139 = vector.load %arg7[%c0_46, %c0_47] : memref<8x128xf32, #tpu.memory_space<vmem>>, vector<8x128xf32>
    tpu.vector_store %arg7[%c0_46, %c0_47], %138 {strides = array<i32>} : memref<8x128xf32, #tpu.memory_space<vmem>>, vector<8x128xf32>,
    %c0_i32_48 = arith.constant 0 : i32
    %140 = arith.cmpi eq, %arg1, %c0_i32_48 : i32
    %141 = arith.extui %140 : i1 to i32
    %c0_i32_49 = arith.constant 0 : i32
    %142 = arith.cmpi ne, %141, %c0_i32_49 : i32
    scf.if %142 {
      %c0_50 = arith.constant 0 : index
      %c0_51 = arith.constant 0 : index
      %143 = vector.load %arg7[%c0_50, %c0_51] : memref<8x128xf32, #tpu.memory_space<vmem>>, vector<8x128xf32>
      %c0_52 = arith.constant 0 : index
      %c0_53 = arith.constant 0 : index
      %c0_54 = arith.constant 0 : index
      %144 = vector.load %arg6[%c0_52, %c0_53, %c0_54] : memref<1x8x128xf32, #tpu.memory_space<vmem>>, vector<1x8x128xf32>
      %145 = vector.shape_cast %144 : vector<1x8x128xf32> to vector<8x128xf32>
      %146 = vector.shape_cast %143 : vector<8x128xf32> to vector<1x8x128xf32>
      tpu.vector_store %arg6[%c0_52, %c0_53, %c0_54], %146 {strides = array<i32>} : memref<1x8x128xf32, #tpu.memory_space<vmem>>, vector<1x8x128xf32>,
    } else {
    }
    return
  }
  func.func @transform_0(%arg0: i32, %arg1: i32) -> (i32, i32, i32) {
    %c1_i32 = arith.constant 1 : i32
    %0 = arith.muli %arg0, %c1_i32 : i32
    %1 = arith.addi %0, %arg1 : i32
    %c0_i32 = arith.constant 0 : i32
    %c0_i32_0 = arith.constant 0 : i32
    %c0_i32_1 = arith.constant 0 : i32
    return %1, %c0_i32, %c0_i32_0 : i32, i32, i32
  }
  func.func @transform_1(%arg0: i32, %arg1: i32) -> (i32, i32, i32) {
    %c1_i32 = arith.constant 1 : i32
    %0 = arith.muli %arg0, %c1_i32 : i32
    %1 = arith.addi %0, %arg1 : i32
    %c0_i32 = arith.constant 0 : i32
    %c0_i32_0 = arith.constant 0 : i32
    %c0_i32_1 = arith.constant 0 : i32
    return %1, %c0_i32, %c0_i32_0 : i32, i32, i32
  }
  func.func @transform_2(%arg0: i32, %arg1: i32) -> (i32, i32) {
    %c0_i32 = arith.constant 0 : i32
    %c0_i32_0 = arith.constant 0 : i32
    %c0_i32_1 = arith.constant 0 : i32
    return %c0_i32, %c0_i32_0 : i32, i32
  }
  func.func @transform_3(%arg0: i32, %arg1: i32) -> (i32, i32) {
    %c0_i32 = arith.constant 0 : i32
    %c0_i32_0 = arith.constant 0 : i32
    %c0_i32_1 = arith.constant 0 : i32
    return %c0_i32, %c0_i32_0 : i32, i32
  }
  func.func @transform_4(%arg0: i32, %arg1: i32) -> (i32, i32, i32) {
    %c0_i32 = arith.constant 0 : i32
    %c0_i32_0 = arith.constant 0 : i32
    %c0_i32_1 = arith.constant 0 : i32
    return %arg0, %c0_i32, %c0_i32_0 : i32, i32, i32
  }
}

</mosaic_0001>

<llo_original>
// kernel: tpu_custom_call.1
$region0: #{tpu_custom_call.1}
  #allocation0 [shape = 'u32[]', space=smem, size = 0x4, offset = 0x4, fixed_abs, tag = 'smem constant byte address 0x4 - core index']
  #allocation1 [shape = 'u32[144,128]{1,0:T(1,128)}', space=vmem, size = 0x12000, scoped, tag = 'internal scratch']
  #allocation2 [shape = 'f32[8,128]{1,0:T(8,128)}', space=vmem, size = 0x1000, scoped, tag = 'scratch operand']
  %s0 = inlined_call_operand.vmem [shape: f32[1,128,16], index: 0, kind: input, shape index: {}]
  %s1 = inlined_call_operand.vmem [shape: f32[1,128,16], index: 1, kind: input, shape index: {}]
  %s2 = inlined_call_operand.vmem [shape: f32[16,256], index: 2, kind: input, shape index: {}]
  %s3 = inlined_call_operand.vmem [shape: f32[256,128], index: 3, kind: input, shape index: {}]
  %s4 = inlined_call_operand.hbm [shape: f32[1,8,128], index: 4, kind: output, shape index: {}]
  %s5 = sld [smem:[#allocation0]]
  $region34: #{tpu_custom_call.1} parent=0
    _
  %s7 = ssub.s32 1, %s5
  %s8 = scalar_select 0, %s7, %s5
  $region1: #{tpu_custom_call.1} parent=0
    #allocation3 [shape = 'u8[4096]{0}', space=vmem, size = 0x1000, scoped, tag = 'output window, operand 0, single buffered']
    #allocation4 [shape = 's32[1]{0}', space=sflag, size = 0x4, scoped, tag = 'scoped memory for tpu_custom_call.1']
    %9 = vsyncpa [#allocation4], 0
    // Predicated region
    $region2: #{tpu_custom_call.1} parent=1 // pred_check
      _
    $region3: #{tpu_custom_call.1} parent=1 // pred_check_branch
      %11 = sbr.rel (0) target = $region5
    $region4: #{tpu_custom_call.1} parent=1 // pred_region
      %s12 = sadd.s32 0, 0
      %p13 = scmp.lt.s32.totalorder %s12, 0
      %s14 = scalar_select %p13, %s12, 0
      %s15 = smul.addr %s14, 16
      %s16 = smul.addr %s15, 8
      %s17 = scalar_lea.vmem %s0, %s16
      %s18 = sadd.s32 0, 0
    $region5: #{tpu_custom_call.1} parent=1 // pred_fallthru
      _
    // Predicated region
    $region6: #{tpu_custom_call.1} parent=1 // pred_check
      _
    $region7: #{tpu_custom_call.1} parent=1 // pred_check_branch
      %20 = sbr.rel (0) target = $region9
    $region8: #{tpu_custom_call.1} parent=1 // pred_region
      %s21 = sadd.s32 0, 0
      %p22 = scmp.lt.s32.totalorder %s21, 0
      %s23 = scalar_select %p22, %s21, 0
      %s24 = smul.addr %s23, 16
      %s25 = smul.addr %s24, 8
      %s26 = scalar_lea.vmem %s1, %s25
      %s27 = sadd.s32 0, 0
    $region9: #{tpu_custom_call.1} parent=1 // pred_fallthru
      _
    // Predicated region
    $region10: #{tpu_custom_call.1} parent=1 // pred_check
      _
    $region11: #{tpu_custom_call.1} parent=1 // pred_check_branch
      %29 = sbr.rel (0) target = $region13
    $region12: #{tpu_custom_call.1} parent=1 // pred_region
      _
    $region13: #{tpu_custom_call.1} parent=1 // pred_fallthru
      _
    // Predicated region
    $region14: #{tpu_custom_call.1} parent=1 // pred_check
      _
    $region15: #{tpu_custom_call.1} parent=1 // pred_check_branch
      %31 = sbr.rel (0) target = $region17
    $region16: #{tpu_custom_call.1} parent=1 // pred_region
      _
    $region17: #{tpu_custom_call.1} parent=1 // pred_fallthru
      _
    %s32 = sadd.s32 0, 0
    %p33 = scmp.lt.s32.totalorder %s32, 0
    %s34 = scalar_select %p33, %s32, 0
    %s35 = smul.addr %s34, 16
    %s36 = smul.addr %s35, 8
    %s37 = scalar_lea.vmem %s0, %s36
    %s38 = sadd.s32 0, 0
    %p39 = scmp.lt.s32.totalorder %s38, 0
    %s40 = scalar_select %p39, %s38, 0
    %s41 = smul.addr %s40, 16
    %s42 = smul.addr %s41, 8
    %s43 = scalar_lea.vmem %s1, %s42
    %s44 = sadd.s32 0, 0
    %p45 = scmp.lt.s32.totalorder %s44, 0
    %s46 = scalar_select %p45, %s44, 0
    %s47 = smul.addr %s46, 16
    %s48 = smul.addr %s47, 8
    %s49 = scalar_lea.vmem %s0, %s48
    %s50 = sadd.s32 0, 0
    %s51 = sadd.s32 0, 0
    %p52 = scmp.lt.s32.totalorder %s51, 0
    %s53 = scalar_select %p52, %s51, 0
    %s54 = smul.addr %s53, 16
    %s55 = smul.addr %s54, 8
    %s56 = scalar_lea.vmem %s1, %s55
    %s57 = sadd.s32 0, 0
    %p58 = scmp.eq.s32.totalorder 0, 0
    // Predicated region
    $region18: #{tpu_custom_call.1} parent=1 // pred_check
      %p59 = pneg %p58
    $region19: #{tpu_custom_call.1} parent=1 // pred_check_branch
      %61 = sbr.rel (%p59) target = $region21
    $region20: #{tpu_custom_call.1} parent=1 // pred_region
      %62 = vst [vmem:[#allocation2] sm:$0xff] 0.0
    $region21: #{tpu_custom_call.1} parent=1 // pred_fallthru
      _
    %v63 = vld [vmem:[%s2] sm:$0xff]
    %v64 = vld [vmem:[%s2 + $0x8] sm:$0xff]
    %v65 = vld [vmem:[%s2 + $0x10] sm:$0xff]
    %v66 = vld [vmem:[%s2 + $0x18] sm:$0xff]
    %v67 = vld [vmem:[%s3] sm:$0xff]
    %v68 = vld [vmem:[%s3 + $0x8] sm:$0xff]
    %v69 = vld [vmem:[%s3 + $0x10] sm:$0xff]
    %v70 = vld [vmem:[%s3 + $0x18] sm:$0xff]
    %v71 = vld [vmem:[%s3 + $0x20] sm:$0xff]
    %v72 = vld [vmem:[%s3 + $0x28] sm:$0xff]
    %v73 = vld [vmem:[%s3 + $0x30] sm:$0xff]
    %v74 = vld [vmem:[%s3 + $0x38] sm:$0xff]
    %v75 = vld [vmem:[%s3 + $0x40] sm:$0xff]
    %v76 = vld [vmem:[%s3 + $0x48] sm:$0xff]
    %v77 = vld [vmem:[%s3 + $0x50] sm:$0xff]
    %v78 = vld [vmem:[%s3 + $0x58] sm:$0xff]
    %v79 = vld [vmem:[%s3 + $0x60] sm:$0xff]
    %v80 = vld [vmem:[%s3 + $0x68] sm:$0xff]
    %v81 = vld [vmem:[%s3 + $0x70] sm:$0xff]
    %v82 = vld [vmem:[%s3 + $0x78] sm:$0xff]
    %v83 = vld [vmem:[%s3 + $0x80] sm:$0xff]
    %v84 = vld [vmem:[%s3 + $0x88] sm:$0xff]
    %v85 = vld [vmem:[%s3 + $0x90] sm:$0xff]
    %v86 = vld [vmem:[%s3 + $0x98] sm:$0xff]
    %v87 = vld [vmem:[%s3 + $0xa0] sm:$0xff]
    %v88 = vld [vmem:[%s3 + $0xa8] sm:$0xff]
    %v89 = vld [vmem:[%s3 + $0xb0] sm:$0xff]
    %v90 = vld [vmem:[%s3 + $0xb8] sm:$0xff]
    %v91 = vld [vmem:[%s3 + $0xc0] sm:$0xff]
    %v92 = vld [vmem:[%s3 + $0xc8] sm:$0xff]
    %v93 = vld [vmem:[%s3 + $0xd0] sm:$0xff]
    %v94 = vld [vmem:[%s3 + $0xd8] sm:$0xff]
    %v95 = vld [vmem:[%s3 + $0xe0] sm:$0xff]
    %v96 = vld [vmem:[%s3 + $0xe8] sm:$0xff]
    %v97 = vld [vmem:[%s3 + $0xf0] sm:$0xff]
    %v98 = vld [vmem:[%s3 + $0xf8] sm:$0xff]
    %v99 = vld [vmem:[%s49] sm:$0xff]
    %v100 = vld [vmem:[%s49 + $0x8] sm:$0xff]
    %v101 = vld [vmem:[%s49 + $0x10] sm:$0xff]
    %v102 = vld [vmem:[%s49 + $0x18] sm:$0xff]
    %v103 = vld [vmem:[%s49 + $0x20] sm:$0xff]
    %v104 = vld [vmem:[%s49 + $0x28] sm:$0xff]
    %v105 = vld [vmem:[%s49 + $0x30] sm:$0xff]
    %v106 = vld [vmem:[%s49 + $0x38] sm:$0xff]
    %v107 = vld [vmem:[%s49 + $0x40] sm:$0xff]
    %v108 = vld [vmem:[%s49 + $0x48] sm:$0xff]
    %v109 = vld [vmem:[%s49 + $0x50] sm:$0xff]
    %v110 = vld [vmem:[%s49 + $0x58] sm:$0xff]
    %v111 = vld [vmem:[%s49 + $0x60] sm:$0xff]
    %v112 = vld [vmem:[%s49 + $0x68] sm:$0xff]
    %v113 = vld [vmem:[%s49 + $0x70] sm:$0xff]
    %v114 = vld [vmem:[%s49 + $0x78] sm:$0xff]
    %vm115 = vcmask 130048
    %v117 = vsel %vm115, %v99, 0
    %v120 = vsel %vm115, %v100, 0
    %v123 = vsel %vm115, %v101, 0
    %v126 = vsel %vm115, %v102, 0
    %v129 = vsel %vm115, %v103, 0
    %v132 = vsel %vm115, %v104, 0
    %v135 = vsel %vm115, %v105, 0
    %v138 = vsel %vm115, %v106, 0
    %v141 = vsel %vm115, %v107, 0
    %v144 = vsel %vm115, %v108, 0
    %v147 = vsel %vm115, %v109, 0
    %v150 = vsel %vm115, %v110, 0
    %v153 = vsel %vm115, %v111, 0
    %v156 = vsel %vm115, %v112, 0
    %v159 = vsel %vm115, %v113, 0
    %v162 = vsel %vm115, %v114, 0
    %164 = vmatprep.subr.mxu0 %v64
    %165 = vmatpush1.msra.mxu0 %v63
    %166 = vmatprep.subr.mxu0 %v66
    %167 = vmatpush1.msra.mxu0 %v65
    %168 = vmatprep.subr.mxu0 0.0
    %169 = vmatpush1.msra.mxu0 0.0
    %170 = vmatprep.subr.mxu0 0.0
    %171 = vmatpush1.msra.mxu0 0.0
    %172 = vmatprep.subr.mxu0 0.0
    %173 = vmatpush1.msra.mxu0 0.0
    %174 = vmatprep.subr.mxu0 0.0
    %175 = vmatpush1.msra.mxu0 0.0
    %176 = vmatprep.subr.mxu0 0.0
    %177 = vmatpush1.msra.mxu0 0.0
    %178 = vmatprep.subr.mxu0 0.0
    %179 = vmatpush1.msra.mxu0 0.0
    %180 = vmatprep.subr.mxu0 0.0
    %181 = vmatpush1.msra.mxu0 0.0
    %182 = vmatprep.subr.mxu0 0.0
    %183 = vmatpush1.msra.mxu0 0.0
    %184 = vmatprep.subr.mxu0 0.0
    %185 = vmatpush1.msra.mxu0 0.0
    %186 = vmatprep.subr.mxu0 0.0
    %187 = vmatpush1.msra.mxu0 0.0
    %188 = vmatprep.subr.mxu0 0.0
    %189 = vmatpush1.msra.mxu0 0.0
    %190 = vmatprep.subr.mxu0 0.0
    %191 = vmatpush1.msra.mxu0 0.0
    %192 = vmatprep.subr.mxu0 0.0
    %193 = vmatpush1.msra.mxu0 0.0
    %194 = vmatprep.subr.mxu0 0.0
    %195 = vmatpush1.msra.mxu0 0.0
    %196 = vmatprep.subr.mxu0 0.0
    %197 = vmatpush1.msra.mxu0 0.0
    %198 = vmatprep.subr.mxu0 0.0
    %199 = vmatpush1.msra.mxu0 0.0
    %200 = vmatprep.subr.mxu0 0.0
    %201 = vmatpush1.msra.mxu0 0.0
    %202 = vmatprep.subr.mxu0 0.0
    %203 = vmatpush1.msra.mxu0 0.0
    %204 = vmatprep.subr.mxu0 0.0
    %205 = vmatpush1.msra.mxu0 0.0
    %206 = vmatprep.subr.mxu0 0.0
    %207 = vmatpush1.msra.mxu0 0.0
    %208 = vmatprep.subr.mxu0 0.0
    %209 = vmatpush1.msra.mxu0 0.0
    %210 = vmatprep.subr.mxu0 0.0
    %211 = vmatpush1.msra.mxu0 0.0
    %212 = vmatprep.subr.mxu0 0.0
    %213 = vmatpush1.msra.mxu0 0.0
    %214 = vmatprep.subr.mxu0 0.0
    %215 = vmatpush1.msra.mxu0 0.0
    %216 = vmatprep.subr.mxu0 0.0
    %217 = vmatpush1.msra.mxu0 0.0
    %218 = vmatprep.subr.mxu0 0.0
    %219 = vmatpush1.msra.mxu0 0.0
    %220 = vmatprep.subr.mxu0 0.0
    %221 = vmatpush1.msra.mxu0 0.0
    %222 = vmatprep.subr.mxu0 0.0
    %223 = vmatpush1.msra.mxu0 0.0
    %224 = vmatprep.subr.mxu0 0.0
    %225 = vmatpush1.msra.mxu0 0.0
    %226 = vmatprep.subr.mxu0 0.0
    %227 = vmatpush1.msra.mxu0 0.0
    %228 = vmatprep.mubr.f32.mxu0 0.0
    %229 = vmatmul.mubr.f32.gmra.mrb[0].mxu0 %v117
    %v230 = vpop.f32.mrb[0].mxu0
    %v231 = vadd.f32 0.0, %v230
    %v232 = vpop.f32.mrb[0].mxu0
    %v233 = vadd.f32 0.0, %v232
    %234 = vmatprep.mubr.f32.mxu0 0.0
    %235 = vmatmul.mubr.f32.gmra.mrb[0].mxu0 %v120
    %v236 = vpop.f32.mrb[0].mxu0
    %v237 = vadd.f32 0.0, %v236
    %v238 = vpop.f32.mrb[0].mxu0
    %v239 = vadd.f32 0.0, %v238
    %240 = vmatprep.mubr.f32.mxu0 0.0
    %241 = vmatmul.mubr.f32.gmra.mrb[0].mxu0 %v123
    %v242 = vpop.f32.mrb[0].mxu0
    %v243 = vadd.f32 0.0, %v242
    %v244 = vpop.f32.mrb[0].mxu0
    %v245 = vadd.f32 0.0, %v244
    %246 = vmatprep.mubr.f32.mxu0 0.0
    %247 = vmatmul.mubr.f32.gmra.mrb[0].mxu0 %v126
    %v248 = vpop.f32.mrb[0].mxu0
    %v249 = vadd.f32 0.0, %v248
    %v250 = vpop.f32.mrb[0].mxu0
    %v251 = vadd.f32 0.0, %v250
    %252 = vmatprep.mubr.f32.mxu0 0.0
    %253 = vmatmul.mubr.f32.gmra.mrb[0].mxu0 %v129
    %v254 = vpop.f32.mrb[0].mxu0
    %v255 = vadd.f32 0.0, %v254
    %v256 = vpop.f32.mrb[0].mxu0
    %v257 = vadd.f32 0.0, %v256
    %258 = vmatprep.mubr.f32.mxu0 0.0
    %259 = vmatmul.mubr.f32.gmra.mrb[0].mxu0 %v132
    %v260 = vpop.f32.mrb[0].mxu0
    %v261 = vadd.f32 0.0, %v260
    %v262 = vpop.f32.mrb[0].mxu0
    %v263 = vadd.f32 0.0, %v262
    %264 = vmatprep.mubr.f32.mxu0 0.0
    %265 = vmatmul.mubr.f32.gmra.mrb[0].mxu0 %v135
    %v266 = vpop.f32.mrb[0].mxu0
    %v267 = vadd.f32 0.0, %v266
    %v268 = vpop.f32.mrb[0].mxu0
    %v269 = vadd.f32 0.0, %v268
    %270 = vmatprep.mubr.f32.mxu0 0.0
    %271 = vmatmul.mubr.f32.gmra.mrb[0].mxu0 %v138
    %v272 = vpop.f32.mrb[0].mxu0
    %v273 = vadd.f32 0.0, %v272
    %v274 = vpop.f32.mrb[0].mxu0
    %v275 = vadd.f32 0.0, %v274
    %276 = vmatprep.mubr.f32.mxu0 0.0
    %277 = vmatmul.mubr.f32.gmra.mrb[0].mxu0 %v141
    %v278 = vpop.f32.mrb[0].mxu0
    %v279 = vadd.f32 0.0, %v278
    %v280 = vpop.f32.mrb[0].mxu0
    %v281 = vadd.f32 0.0, %v280
    %282 = vmatprep.mubr.f32.mxu0 0.0
    %283 = vmatmul.mubr.f32.gmra.mrb[0].mxu0 %v144
    %v284 = vpop.f32.mrb[0].mxu0
    %v285 = vadd.f32 0.0, %v284
    %v286 = vpop.f32.mrb[0].mxu0
    %v287 = vadd.f32 0.0, %v286
    %288 = vmatprep.mubr.f32.mxu0 0.0
    %289 = vmatmul.mubr.f32.gmra.mrb[0].mxu0 %v147
    %v290 = vpop.f32.mrb[0].mxu0
    %v291 = vadd.f32 0.0, %v290
    %v292 = vpop.f32.mrb[0].mxu0
    %v293 = vadd.f32 0.0, %v292
    %294 = vmatprep.mubr.f32.mxu0 0.0
    %295 = vmatmul.mubr.f32.gmra.mrb[0].mxu0 %v150
    %v296 = vpop.f32.mrb[0].mxu0
    %v297 = vadd.f32 0.0, %v296
    %v298 = vpop.f32.mrb[0].mxu0
    %v299 = vadd.f32 0.0, %v298
    %300 = vmatprep.mubr.f32.mxu0 0.0
    %301 = vmatmul.mubr.f32.gmra.mrb[0].mxu0 %v153
    %v302 = vpop.f32.mrb[0].mxu0
    %v303 = vadd.f32 0.0, %v302
    %v304 = vpop.f32.mrb[0].mxu0
    %v305 = vadd.f32 0.0, %v304
    %306 = vmatprep.mubr.f32.mxu0 0.0
    %307 = vmatmul.mubr.f32.gmra.mrb[0].mxu0 %v156
    %v308 = vpop.f32.mrb[0].mxu0
    %v309 = vadd.f32 0.0, %v308
    %v310 = vpop.f32.mrb[0].mxu0
    %v311 = vadd.f32 0.0, %v310
    %312 = vmatprep.mubr.f32.mxu0 0.0
    %313 = vmatmul.mubr.f32.gmra.mrb[0].mxu0 %v159
    %v314 = vpop.f32.mrb[0].mxu0
    %v315 = vadd.f32 0.0, %v314
    %v316 = vpop.f32.mrb[0].mxu0
    %v317 = vadd.f32 0.0, %v316
    %318 = vmatprep.mubr.f32.mxu0 0.0
    %319 = vmatmul.mubr.f32.gmra.mrb[0].mxu0 %v162
    %v320 = vpop.f32.mrb[0].mxu0
    %v321 = vadd.f32 0.0, %v320
    %v322 = vpop.f32.mrb[0].mxu0
    %v323 = vadd.f32 0.0, %v322
    %324 = vdwg.mxu0
    %325 = vmatprep.subr.mxu0 %v233
    %326 = vmatpush1.msra.mxu0 %v231
    %327 = vmatprep.subr.mxu0 %v239
    %328 = vmatpush1.msra.mxu0 %v237
    %329 = vmatprep.subr.mxu0 %v245
    %330 = vmatpush1.msra.mxu0 %v243
    %331 = vmatprep.subr.mxu0 %v251
    %332 = vmatpush1.msra.mxu0 %v249
    %333 = vmatprep.subr.mxu0 %v257
    %334 = vmatpush1.msra.mxu0 %v255
    %335 = vmatprep.subr.mxu0 %v263
    %336 = vmatpush1.msra.mxu0 %v261
    %337 = vmatprep.subr.mxu0 %v269
    %338 = vmatpush1.msra.mxu0 %v267
    %339 = vmatprep.subr.mxu0 %v275
    %340 = vmatpush1.msra.mxu0 %v273
    %341 = vmatprep.subr.mxu0 %v281
    %342 = vmatpush1.msra.mxu0 %v279
    %343 = vmatprep.subr.mxu0 %v287
    %344 = vmatpush1.msra.mxu0 %v285
    %345 = vmatprep.subr.mxu0 %v293
    %346 = vmatpush1.msra.mxu0 %v291
    %347 = vmatprep.subr.mxu0 %v299
    %348 = vmatpush1.msra.mxu0 %v297
    %349 = vmatprep.subr.mxu0 %v305
    %350 = vmatpush1.msra.mxu0 %v303
    %351 = vmatprep.subr.mxu0 %v311
    %352 = vmatpush1.msra.mxu0 %v309
    %353 = vmatprep.subr.mxu0 %v317
    %354 = vmatpush1.msra.mxu0 %v315
    %355 = vmatprep.subr.mxu0 %v323
    %356 = vmatpush1.msra.mxu0 %v321
    %357 = vmatprep.subr.mxu0 0.0
    %358 = vmatpush1.msra.mxu0 0.0
    %359 = vmatprep.subr.mxu0 0.0
    %360 = vmatpush1.msra.mxu0 0.0
    %361 = vmatprep.subr.mxu0 0.0
    %362 = vmatpush1.msra.mxu0 0.0
    %363 = vmatprep.subr.mxu0 0.0
    %364 = vmatpush1.msra.mxu0 0.0
    %365 = vmatprep.subr.mxu0 0.0
    %366 = vmatpush1.msra.mxu0 0.0
    %367 = vmatprep.subr.mxu0 0.0
    %368 = vmatpush1.msra.mxu0 0.0
    %369 = vmatprep.subr.mxu0 0.0
    %370 = vmatpush1.msra.mxu0 0.0
    %371 = vmatprep.subr.mxu0 0.0
    %372 = vmatpush1.msra.mxu0 0.0
    %373 = vmatprep.subr.mxu0 0.0
    %374 = vmatpush1.msra.mxu0 0.0
    %375 = vmatprep.subr.mxu0 0.0
    %376 = vmatpush1.msra.mxu0 0.0
    %377 = vmatprep.subr.mxu0 0.0
    %378 = vmatpush1.msra.mxu0 0.0
    %379 = vmatprep.subr.mxu0 0.0
    %380 = vmatpush1.msra.mxu0 0.0
    %381 = vmatprep.subr.mxu0 0.0
    %382 = vmatpush1.msra.mxu0 0.0
    %383 = vmatprep.subr.mxu0 0.0
    %384 = vmatpush1.msra.mxu0 0.0
    %385 = vmatprep.subr.mxu0 0.0
    %386 = vmatpush1.msra.mxu0 0.0
    %387 = vmatprep.subr.mxu0 0.0
    %388 = vmatpush1.msra.mxu0 0.0
    %389 = vmatprep.mubr.f32.mxu0 0.0
    %390 = vmatmul.mubr.f32.gmra.mrb[0].mxu0 %v67
    %v391 = vpop.f32.mrb[0].mxu0
    %v392 = vadd.f32 0.0, %v391
    %v393 = vpop.f32.mrb[0].mxu0
    %v394 = vadd.f32 0.0, %v393
    %395 = vmatprep.mubr.f32.mxu0 0.0
    %396 = vmatmul.mubr.f32.gmra.mrb[0].mxu0 %v68
    %v397 = vpop.f32.mrb[0].mxu0
    %v398 = vadd.f32 0.0, %v397
    %v399 = vpop.f32.mrb[0].mxu0
    %v400 = vadd.f32 0.0, %v399
    %401 = vmatprep.mubr.f32.mxu0 0.0
    %402 = vmatmul.mubr.f32.gmra.mrb[0].mxu0 %v69
    %v403 = vpop.f32.mrb[0].mxu0
    %v404 = vadd.f32 0.0, %v403
    %v405 = vpop.f32.mrb[0].mxu0
    %v406 = vadd.f32 0.0, %v405
    %407 = vmatprep.mubr.f32.mxu0 0.0
    %408 = vmatmul.mubr.f32.gmra.mrb[0].mxu0 %v70
    %v409 = vpop.f32.mrb[0].mxu0
    %v410 = vadd.f32 0.0, %v409
    %v411 = vpop.f32.mrb[0].mxu0
    %v412 = vadd.f32 0.0, %v411
    %413 = vmatprep.mubr.f32.mxu0 0.0
    %414 = vmatmul.mubr.f32.gmra.mrb[0].mxu0 %v71
    %v415 = vpop.f32.mrb[0].mxu0
    %v416 = vadd.f32 0.0, %v415
    %v417 = vpop.f32.mrb[0].mxu0
    %v418 = vadd.f32 0.0, %v417
    %419 = vmatprep.mubr.f32.mxu0 0.0
    %420 = vmatmul.mubr.f32.gmra.mrb[0].mxu0 %v72
    %v421 = vpop.f32.mrb[0].mxu0
    %v422 = vadd.f32 0.0, %v421
    %v423 = vpop.f32.mrb[0].mxu0
    %v424 = vadd.f32 0.0, %v423
    %425 = vmatprep.mubr.f32.mxu0 0.0
    %426 = vmatmul.mubr.f32.gmra.mrb[0].mxu0 %v73
    %v427 = vpop.f32.mrb[0].mxu0
    %v428 = vadd.f32 0.0, %v427
    %v429 = vpop.f32.mrb[0].mxu0
    %v430 = vadd.f32 0.0, %v429
    %431 = vmatprep.mubr.f32.mxu0 0.0
    %432 = vmatmul.mubr.f32.gmra.mrb[0].mxu0 %v74
    %v433 = vpop.f32.mrb[0].mxu0
    %v434 = vadd.f32 0.0, %v433
    %v435 = vpop.f32.mrb[0].mxu0
    %v436 = vadd.f32 0.0, %v435
    %437 = vmatprep.mubr.f32.mxu0 0.0
    %438 = vmatmul.mubr.f32.gmra.mrb[0].mxu0 %v75
    %v439 = vpop.f32.mrb[0].mxu0
    %v440 = vadd.f32 0.0, %v439
    %v441 = vpop.f32.mrb[0].mxu0
    %v442 = vadd.f32 0.0, %v441
    %443 = vmatprep.mubr.f32.mxu0 0.0
    %444 = vmatmul.mubr.f32.gmra.mrb[0].mxu0 %v76
    %v445 = vpop.f32.mrb[0].mxu0
    %v446 = vadd.f32 0.0, %v445
    %v447 = vpop.f32.mrb[0].mxu0
    %v448 = vadd.f32 0.0, %v447
    %449 = vmatprep.mubr.f32.mxu0 0.0
    %450 = vmatmul.mubr.f32.gmra.mrb[0].mxu0 %v77
    %v451 = vpop.f32.mrb[0].mxu0
    %v452 = vadd.f32 0.0, %v451
    %v453 = vpop.f32.mrb[0].mxu0
    %v454 = vadd.f32 0.0, %v453
    %455 = vmatprep.mubr.f32.mxu0 0.0
    %456 = vmatmul.mubr.f32.gmra.mrb[0].mxu0 %v78
    %v457 = vpop.f32.mrb[0].mxu0
    %v458 = vadd.f32 0.0, %v457
    %v459 = vpop.f32.mrb[0].mxu0
    %v460 = vadd.f32 0.0, %v459
    %461 = vmatprep.mubr.f32.mxu0 0.0
    %462 = vmatmul.mubr.f32.gmra.mrb[0].mxu0 %v79
    %v463 = vpop.f32.mrb[0].mxu0
    %v464 = vadd.f32 0.0, %v463
    %v465 = vpop.f32.mrb[0].mxu0
    %v466 = vadd.f32 0.0, %v465
    %467 = vmatprep.mubr.f32.mxu0 0.0
    %468 = vmatmul.mubr.f32.gmra.mrb[0].mxu0 %v80
    %v469 = vpop.f32.mrb[0].mxu0
    %v470 = vadd.f32 0.0, %v469
    %v471 = vpop.f32.mrb[0].mxu0
    %v472 = vadd.f32 0.0, %v471
    %473 = vmatprep.mubr.f32.mxu0 0.0
    %474 = vmatmul.mubr.f32.gmra.mrb[0].mxu0 %v81
    %v475 = vpop.f32.mrb[0].mxu0
    %v476 = vadd.f32 0.0, %v475
    %v477 = vpop.f32.mrb[0].mxu0
    %v478 = vadd.f32 0.0, %v477
    %479 = vmatprep.mubr.f32.mxu0 0.0
    %480 = vmatmul.mubr.f32.gmra.mrb[0].mxu0 %v82
    %v481 = vpop.f32.mrb[0].mxu0
    %v482 = vadd.f32 0.0, %v481
    %v483 = vpop.f32.mrb[0].mxu0
    %v484 = vadd.f32 0.0, %v483
    %485 = vmatprep.mubr.f32.mxu0 0.0
    %486 = vmatmul.mubr.f32.gmra.mrb[0].mxu0 %v83
    %v487 = vpop.f32.mrb[0].mxu0
    %v488 = vadd.f32 0.0, %v487
    %v489 = vpop.f32.mrb[0].mxu0
    %v490 = vadd.f32 0.0, %v489
    %491 = vmatprep.mubr.f32.mxu0 0.0
    %492 = vmatmul.mubr.f32.gmra.mrb[0].mxu0 %v84
    %v493 = vpop.f32.mrb[0].mxu0
    %v494 = vadd.f32 0.0, %v493
    %v495 = vpop.f32.mrb[0].mxu0
    %v496 = vadd.f32 0.0, %v495
    %497 = vmatprep.mubr.f32.mxu0 0.0
    %498 = vmatmul.mubr.f32.gmra.mrb[0].mxu0 %v85
    %v499 = vpop.f32.mrb[0].mxu0
    %v500 = vadd.f32 0.0, %v499
    %v501 = vpop.f32.mrb[0].mxu0
    %v502 = vadd.f32 0.0, %v501
    %503 = vmatprep.mubr.f32.mxu0 0.0
    %504 = vmatmul.mubr.f32.gmra.mrb[0].mxu0 %v86
    %v505 = vpop.f32.mrb[0].mxu0
    %v506 = vadd.f32 0.0, %v505
    %v507 = vpop.f32.mrb[0].mxu0
    %v508 = vadd.f32 0.0, %v507
    %509 = vmatprep.mubr.f32.mxu0 0.0
    %510 = vmatmul.mubr.f32.gmra.mrb[0].mxu0 %v87
    %v511 = vpop.f32.mrb[0].mxu0
    %v512 = vadd.f32 0.0, %v511
    %v513 = vpop.f32.mrb[0].mxu0
    %v514 = vadd.f32 0.0, %v513
    %515 = vmatprep.mubr.f32.mxu0 0.0
    %516 = vmatmul.mubr.f32.gmra.mrb[0].mxu0 %v88
    %v517 = vpop.f32.mrb[0].mxu0
    %v518 = vadd.f32 0.0, %v517
    %v519 = vpop.f32.mrb[0].mxu0
    %v520 = vadd.f32 0.0, %v519
    %521 = vmatprep.mubr.f32.mxu0 0.0
    %522 = vmatmul.mubr.f32.gmra.mrb[0].mxu0 %v89
    %v523 = vpop.f32.mrb[0].mxu0
    %v524 = vadd.f32 0.0, %v523
    %v525 = vpop.f32.mrb[0].mxu0
    %v526 = vadd.f32 0.0, %v525
    %527 = vmatprep.mubr.f32.mxu0 0.0
    %528 = vmatmul.mubr.f32.gmra.mrb[0].mxu0 %v90
    %v529 = vpop.f32.mrb[0].mxu0
    %v530 = vadd.f32 0.0, %v529
    %v531 = vpop.f32.mrb[0].mxu0
    %v532 = vadd.f32 0.0, %v531
    %533 = vmatprep.mubr.f32.mxu0 0.0
    %534 = vmatmul.mubr.f32.gmra.mrb[0].mxu0 %v91
    %v535 = vpop.f32.mrb[0].mxu0
    %v536 = vadd.f32 0.0, %v535
    %v537 = vpop.f32.mrb[0].mxu0
    %v538 = vadd.f32 0.0, %v537
    %539 = vmatprep.mubr.f32.mxu0 0.0
    %540 = vmatmul.mubr.f32.gmra.mrb[0].mxu0 %v92
    %v541 = vpop.f32.mrb[0].mxu0
    %v542 = vadd.f32 0.0, %v541
    %v543 = vpop.f32.mrb[0].mxu0
    %v544 = vadd.f32 0.0, %v543
    %545 = vmatprep.mubr.f32.mxu0 0.0
    %546 = vmatmul.mubr.f32.gmra.mrb[0].mxu0 %v93
    %v547 = vpop.f32.mrb[0].mxu0
    %v548 = vadd.f32 0.0, %v547
    %v549 = vpop.f32.mrb[0].mxu0
    %v550 = vadd.f32 0.0, %v549
    %551 = vmatprep.mubr.f32.mxu0 0.0
    %552 = vmatmul.mubr.f32.gmra.mrb[0].mxu0 %v94
    %v553 = vpop.f32.mrb[0].mxu0
    %v554 = vadd.f32 0.0, %v553
    %v555 = vpop.f32.mrb[0].mxu0
    %v556 = vadd.f32 0.0, %v555
    %557 = vmatprep.mubr.f32.mxu0 0.0
    %558 = vmatmul.mubr.f32.gmra.mrb[0].mxu0 %v95
    %v559 = vpop.f32.mrb[0].mxu0
    %v560 = vadd.f32 0.0, %v559
    %v561 = vpop.f32.mrb[0].mxu0
    %v562 = vadd.f32 0.0, %v561
    %563 = vmatprep.mubr.f32.mxu0 0.0
    %564 = vmatmul.mubr.f32.gmra.mrb[0].mxu0 %v96
    %v565 = vpop.f32.mrb[0].mxu0
    %v566 = vadd.f32 0.0, %v565
    %v567 = vpop.f32.mrb[0].mxu0
    %v568 = vadd.f32 0.0, %v567
    %569 = vmatprep.mubr.f32.mxu0 0.0
    %570 = vmatmul.mubr.f32.gmra.mrb[0].mxu0 %v97
    %v571 = vpop.f32.mrb[0].mxu0
    %v572 = vadd.f32 0.0, %v571
    %v573 = vpop.f32.mrb[0].mxu0
    %v574 = vadd.f32 0.0, %v573
    %575 = vmatprep.mubr.f32.mxu0 0.0
    %576 = vmatmul.mubr.f32.gmra.mrb[0].mxu0 %v98
    %v577 = vpop.f32.mrb[0].mxu0
    %v578 = vadd.f32 0.0, %v577
    %v579 = vpop.f32.mrb[0].mxu0
    %v580 = vadd.f32 0.0, %v579
    %581 = vdwg.mxu0
    %v582 = vsub.f32 %v392, %v490
    %v583 = vsub.f32 %v398, %v496
    %v584 = vsub.f32 %v404, %v502
    %v585 = vsub.f32 %v410, %v508
    %v586 = vsub.f32 %v416, %v514
    %v587 = vsub.f32 %v422, %v520
    %v588 = vsub.f32 %v428, %v526
    %v589 = vsub.f32 %v434, %v532
    %v590 = vsub.f32 %v440, %v538
    %v591 = vsub.f32 %v446, %v544
    %v592 = vsub.f32 %v452, %v550
    %v593 = vsub.f32 %v458, %v556
    %v594 = vsub.f32 %v464, %v562
    %v595 = vsub.f32 %v470, %v568
    %v596 = vsub.f32 %v476, %v574
    %v597 = vsub.f32 %v482, %v580
    %v598 = vadd.f32 %v394, %v488
    %v599 = vadd.f32 %v400, %v494
    %v600 = vadd.f32 %v406, %v500
    %v601 = vadd.f32 %v412, %v506
    %v602 = vadd.f32 %v418, %v512
    %v603 = vadd.f32 %v424, %v518
    %v604 = vadd.f32 %v430, %v524
    %v605 = vadd.f32 %v436, %v530
    %v606 = vadd.f32 %v442, %v536
    %v607 = vadd.f32 %v448, %v542
    %v608 = vadd.f32 %v454, %v548
    %v609 = vadd.f32 %v460, %v554
    %v610 = vadd.f32 %v466, %v560
    %v611 = vadd.f32 %v472, %v566
    %v612 = vadd.f32 %v478, %v572
    %v613 = vadd.f32 %v484, %v578
    %v614 = vand.u32 2147483647, %v582
    %v615 = vand.u32 2147483647, %v583
    %v616 = vand.u32 2147483647, %v584
    %v617 = vand.u32 2147483647, %v585
    %v618 = vand.u32 2147483647, %v586
    %v619 = vand.u32 2147483647, %v587
    %v620 = vand.u32 2147483647, %v588
    %v621 = vand.u32 2147483647, %v589
    %v622 = vand.u32 2147483647, %v590
    %v623 = vand.u32 2147483647, %v591
    %v624 = vand.u32 2147483647, %v592
    %v625 = vand.u32 2147483647, %v593
    %v626 = vand.u32 2147483647, %v594
    %v627 = vand.u32 2147483647, %v595
    %v628 = vand.u32 2147483647, %v596
    %v629 = vand.u32 2147483647, %v597
    %v630 = vand.u32 2147483647, %v598
    %v631 = vand.u32 2147483647, %v599
    %v632 = vand.u32 2147483647, %v600
    %v633 = vand.u32 2147483647, %v601
    %v634 = vand.u32 2147483647, %v602
    %v635 = vand.u32 2147483647, %v603
    %v636 = vand.u32 2147483647, %v604
    %v637 = vand.u32 2147483647, %v605
    %v638 = vand.u32 2147483647, %v606
    %v639 = vand.u32 2147483647, %v607
    %v640 = vand.u32 2147483647, %v608
    %v641 = vand.u32 2147483647, %v609
    %v642 = vand.u32 2147483647, %v610
    %v643 = vand.u32 2147483647, %v611
    %v644 = vand.u32 2147483647, %v612
    %v645 = vand.u32 2147483647, %v613
    %v646 = vmax.f32 %v614, %v630
    %v647 = vmax.f32 %v615, %v631
    %v648 = vmax.f32 %v616, %v632
    %v649 = vmax.f32 %v617, %v633
    %v650 = vmax.f32 %v618, %v634
    %v651 = vmax.f32 %v619, %v635
    %v652 = vmax.f32 %v620, %v636
    %v653 = vmax.f32 %v621, %v637
    %v654 = vmax.f32 %v622, %v638
    %v655 = vmax.f32 %v623, %v639
    %v656 = vmax.f32 %v624, %v640
    %v657 = vmax.f32 %v625, %v641
    %v658 = vmax.f32 %v626, %v642
    %v659 = vmax.f32 %v627, %v643
    %v660 = vmax.f32 %v628, %v644
    %v661 = vmax.f32 %v629, %v645
    %v662 = vmin.f32 %v614, %v630
    %v663 = vmin.f32 %v615, %v631
    %v664 = vmin.f32 %v616, %v632
    %v665 = vmin.f32 %v617, %v633
    %v666 = vmin.f32 %v618, %v634
    %v667 = vmin.f32 %v619, %v635
    %v668 = vmin.f32 %v620, %v636
    %v669 = vmin.f32 %v621, %v637
    %v670 = vmin.f32 %v622, %v638
    %v671 = vmin.f32 %v623, %v639
    %v672 = vmin.f32 %v624, %v640
    %v673 = vmin.f32 %v625, %v641
    %v674 = vmin.f32 %v626, %v642
    %v675 = vmin.f32 %v627, %v643
    %v676 = vmin.f32 %v628, %v644
    %v677 = vmin.f32 %v629, %v645
    %v678 = vmul.f32 %v646, 0.41421357
    %v679 = vmul.f32 %v647, 0.41421357
    %v680 = vmul.f32 %v648, 0.41421357
    %v681 = vmul.f32 %v649, 0.41421357
    %v682 = vmul.f32 %v650, 0.41421357
    %v683 = vmul.f32 %v651, 0.41421357
    %v684 = vmul.f32 %v652, 0.41421357
    %v685 = vmul.f32 %v653, 0.41421357
    %v686 = vmul.f32 %v654, 0.41421357
    %v687 = vmul.f32 %v655, 0.41421357
    %v688 = vmul.f32 %v656, 0.41421357
    %v689 = vmul.f32 %v657, 0.41421357
    %v690 = vmul.f32 %v658, 0.41421357
    %v691 = vmul.f32 %v659, 0.41421357
    %v692 = vmul.f32 %v660, 0.41421357
    %v693 = vmul.f32 %v661, 0.41421357
    %vm694 = vcmp.gt.f32.partialorder %v662, %v678
    %vm695 = vcmp.gt.f32.partialorder %v663, %v679
    %vm696 = vcmp.gt.f32.partialorder %v664, %v680
    %vm697 = vcmp.gt.f32.partialorder %v665, %v681
    %vm698 = vcmp.gt.f32.partialorder %v666, %v682
    %vm699 = vcmp.gt.f32.partialorder %v667, %v683
    %vm700 = vcmp.gt.f32.partialorder %v668, %v684
    %vm701 = vcmp.gt.f32.partialorder %v669, %v685
    %vm702 = vcmp.gt.f32.partialorder %v670, %v686
    %vm703 = vcmp.gt.f32.partialorder %v671, %v687
    %vm704 = vcmp.gt.f32.partialorder %v672, %v688
    %vm705 = vcmp.gt.f32.partialorder %v673, %v689
    %vm706 = vcmp.gt.f32.partialorder %v674, %v690
    %vm707 = vcmp.gt.f32.partialorder %v675, %v691
    %vm708 = vcmp.gt.f32.partialorder %v676, %v692
    %vm709 = vcmp.gt.f32.partialorder %v677, %v693
    %v710 = vsub.f32 %v662, %v646
    %v711 = vsub.f32 %v663, %v647
    %v712 = vsub.f32 %v664, %v648
    %v713 = vsub.f32 %v665, %v649
    %v714 = vsub.f32 %v666, %v650
    %v715 = vsub.f32 %v667, %v651
    %v716 = vsub.f32 %v668, %v652
    %v717 = vsub.f32 %v669, %v653
    %v718 = vsub.f32 %v670, %v654
    %v719 = vsub.f32 %v671, %v655
    %v720 = vsub.f32 %v672, %v656
    %v721 = vsub.f32 %v673, %v657
    %v722 = vsub.f32 %v674, %v658
    %v723 = vsub.f32 %v675, %v659
    %v724 = vsub.f32 %v676, %v660
    %v725 = vsub.f32 %v677, %v661
    %v726 = vsel %vm694, %v710, %v662
    %v727 = vsel %vm695, %v711, %v663
    %v728 = vsel %vm696, %v712, %v664
    %v729 = vsel %vm697, %v713, %v665
    %v730 = vsel %vm698, %v714, %v666
    %v731 = vsel %vm699, %v715, %v667
    %v732 = vsel %vm700, %v716, %v668
    %v733 = vsel %vm701, %v717, %v669
    %v734 = vsel %vm702, %v718, %v670
    %v735 = vsel %vm703, %v719, %v671
    %v736 = vsel %vm704, %v720, %v672
    %v737 = vsel %vm705, %v721, %v673
    %v738 = vsel %vm706, %v722, %v674
    %v739 = vsel %vm707, %v723, %v675
    %v740 = vsel %vm708, %v724, %v676
    %v741 = vsel %vm709, %v725, %v677
    %v742 = vadd.f32 %v662, %v646
    %v743 = vadd.f32 %v663, %v647
    %v744 = vadd.f32 %v664, %v648
    %v745 = vadd.f32 %v665, %v649
    %v746 = vadd.f32 %v666, %v650
    %v747 = vadd.f32 %v667, %v651
    %v748 = vadd.f32 %v668, %v652
    %v749 = vadd.f32 %v669, %v653
    %v750 = vadd.f32 %v670, %v654
    %v751 = vadd.f32 %v671, %v655
    %v752 = vadd.f32 %v672, %v656
    %v753 = vadd.f32 %v673, %v657
    %v754 = vadd.f32 %v674, %v658
    %v755 = vadd.f32 %v675, %v659
    %v756 = vadd.f32 %v676, %v660
    %v757 = vadd.f32 %v677, %v661
    %v758 = vsel %vm694, %v742, %v646
    %v759 = vsel %vm695, %v743, %v647
    %v760 = vsel %vm696, %v744, %v648
    %v761 = vsel %vm697, %v745, %v649
    %v762 = vsel %vm698, %v746, %v650
    %v763 = vsel %vm699, %v747, %v651
    %v764 = vsel %vm700, %v748, %v652
    %v765 = vsel %vm701, %v749, %v653
    %v766 = vsel %vm702, %v750, %v654
    %v767 = vsel %vm703, %v751, %v655
    %v768 = vsel %vm704, %v752, %v656
    %v769 = vsel %vm705, %v753, %v657
    %v770 = vsel %vm706, %v754, %v658
    %v771 = vsel %vm707, %v755, %v659
    %v772 = vsel %vm708, %v756, %v660
    %v773 = vsel %vm709, %v757, %v661
    %vm774 = vcmp.gt.f32.partialorder %v758, 0.0
    %vm775 = vcmp.gt.f32.partialorder %v759, 0.0
    %vm776 = vcmp.gt.f32.partialorder %v760, 0.0
    %vm777 = vcmp.gt.f32.partialorder %v761, 0.0
    %vm778 = vcmp.gt.f32.partialorder %v762, 0.0
    %vm779 = vcmp.gt.f32.partialorder %v763, 0.0
    %vm780 = vcmp.gt.f32.partialorder %v764, 0.0
    %vm781 = vcmp.gt.f32.partialorder %v765, 0.0
    %vm782 = vcmp.gt.f32.partialorder %v766, 0.0
    %vm783 = vcmp.gt.f32.partialorder %v767, 0.0
    %vm784 = vcmp.gt.f32.partialorder %v768, 0.0
    %vm785 = vcmp.gt.f32.partialorder %v769, 0.0
    %vm786 = vcmp.gt.f32.partialorder %v770, 0.0
    %vm787 = vcmp.gt.f32.partialorder %v771, 0.0
    %vm788 = vcmp.gt.f32.partialorder %v772, 0.0
    %vm789 = vcmp.gt.f32.partialorder %v773, 0.0
    %v790 = vsel %vm774, %v758, 1.0
    %v791 = vsel %vm775, %v759, 1.0
    %v792 = vsel %vm776, %v760, 1.0
    %v793 = vsel %vm777, %v761, 1.0
    %v794 = vsel %vm778, %v762, 1.0
    %v795 = vsel %vm779, %v763, 1.0
    %v796 = vsel %vm780, %v764, 1.0
    %v797 = vsel %vm781, %v765, 1.0
    %v798 = vsel %vm782, %v766, 1.0
    %v799 = vsel %vm783, %v767, 1.0
    %v800 = vsel %vm784, %v768, 1.0
    %v801 = vsel %vm785, %v769, 1.0
    %v802 = vsel %vm786, %v770, 1.0
    %v803 = vsel %vm787, %v771, 1.0
    %v804 = vsel %vm788, %v772, 1.0
    %v805 = vsel %vm789, %v773, 1.0
    %v806 = vrcp.pop %v790
    %v807 = vrcp.pop %v791
    %v808 = vrcp.pop %v792
    %v809 = vrcp.pop %v793
    %v810 = vrcp.pop %v794
    %v811 = vrcp.pop %v795
    %v812 = vrcp.pop %v796
    %v813 = vrcp.pop %v797
    %v814 = vrcp.pop %v798
    %v815 = vrcp.pop %v799
    %v816 = vrcp.pop %v800
    %v817 = vrcp.pop %v801
    %v818 = vrcp.pop %v802
    %v819 = vrcp.pop %v803
    %v820 = vrcp.pop %v804
    %v821 = vrcp.pop %v805
    %v822 = vmul.f32 %v790, %v806
    %v823 = vmul.f32 %v791, %v807
    %v824 = vmul.f32 %v792, %v808
    %v825 = vmul.f32 %v793, %v809
    %v826 = vmul.f32 %v794, %v810
    %v827 = vmul.f32 %v795, %v811
    %v828 = vmul.f32 %v796, %v812
    %v829 = vmul.f32 %v797, %v813
    %v830 = vmul.f32 %v798, %v814
    %v831 = vmul.f32 %v799, %v815
    %v832 = vmul.f32 %v800, %v816
    %v833 = vmul.f32 %v801, %v817
    %v834 = vmul.f32 %v802, %v818
    %v835 = vmul.f32 %v803, %v819
    %v836 = vmul.f32 %v804, %v820
    %v837 = vmul.f32 %v805, %v821
    %v838 = vsub.f32 2.0, %v822
    %v839 = vsub.f32 2.0, %v823
    %v840 = vsub.f32 2.0, %v824
    %v841 = vsub.f32 2.0, %v825
    %v842 = vsub.f32 2.0, %v826
    %v843 = vsub.f32 2.0, %v827
    %v844 = vsub.f32 2.0, %v828
    %v845 = vsub.f32 2.0, %v829
    %v846 = vsub.f32 2.0, %v830
    %v847 = vsub.f32 2.0, %v831
    %v848 = vsub.f32 2.0, %v832
    %v849 = vsub.f32 2.0, %v833
    %v850 = vsub.f32 2.0, %v834
    %v851 = vsub.f32 2.0, %v835
    %v852 = vsub.f32 2.0, %v836
    %v853 = vsub.f32 2.0, %v837
    %v854 = vmul.f32 %v806, %v838
    %v855 = vmul.f32 %v807, %v839
    %v856 = vmul.f32 %v808, %v840
    %v857 = vmul.f32 %v809, %v841
    %v858 = vmul.f32 %v810, %v842
    %v859 = vmul.f32 %v811, %v843
    %v860 = vmul.f32 %v812, %v844
    %v861 = vmul.f32 %v813, %v845
    %v862 = vmul.f32 %v814, %v846
    %v863 = vmul.f32 %v815, %v847
    %v864 = vmul.f32 %v816, %v848
    %v865 = vmul.f32 %v817, %v849
    %v866 = vmul.f32 %v818, %v850
    %v867 = vmul.f32 %v819, %v851
    %v868 = vmul.f32 %v820, %v852
    %v869 = vmul.f32 %v821, %v853
    %v870 = vmul.f32 %v726, %v854
    %v871 = vmul.f32 %v727, %v855
    %v872 = vmul.f32 %v728, %v856
    %v873 = vmul.f32 %v729, %v857
    %v874 = vmul.f32 %v730, %v858
    %v875 = vmul.f32 %v731, %v859
    %v876 = vmul.f32 %v732, %v860
    %v877 = vmul.f32 %v733, %v861
    %v878 = vmul.f32 %v734, %v862
    %v879 = vmul.f32 %v735, %v863
    %v880 = vmul.f32 %v736, %v864
    %v881 = vmul.f32 %v737, %v865
    %v882 = vmul.f32 %v738, %v866
    %v883 = vmul.f32 %v739, %v867
    %v884 = vmul.f32 %v740, %v868
    %v885 = vmul.f32 %v741, %v869
    %v886 = vsel %vm774, %v870, 0.0
    %v887 = vsel %vm775, %v871, 0.0
    %v888 = vsel %vm776, %v872, 0.0
    %v889 = vsel %vm777, %v873, 0.0
    %v890 = vsel %vm778, %v874, 0.0
    %v891 = vsel %vm779, %v875, 0.0
    %v892 = vsel %vm780, %v876, 0.0
    %v893 = vsel %vm781, %v877, 0.0
    %v894 = vsel %vm782, %v878, 0.0
    %v895 = vsel %vm783, %v879, 0.0
    %v896 = vsel %vm784, %v880, 0.0
    %v897 = vsel %vm785, %v881, 0.0
    %v898 = vsel %vm786, %v882, 0.0
    %v899 = vsel %vm787, %v883, 0.0
    %v900 = vsel %vm788, %v884, 0.0
    %v901 = vsel %vm789, %v885, 0.0
    %v902 = vmul.f32 %v886, %v886
    %v903 = vmul.f32 %v887, %v887
    %v904 = vmul.f32 %v888, %v888
    %v905 = vmul.f32 %v889, %v889
    %v906 = vmul.f32 %v890, %v890
    %v907 = vmul.f32 %v891, %v891
    %v908 = vmul.f32 %v892, %v892
    %v909 = vmul.f32 %v893, %v893
    %v910 = vmul.f32 %v894, %v894
    %v911 = vmul.f32 %v895, %v895
    %v912 = vmul.f32 %v896, %v896
    %v913 = vmul.f32 %v897, %v897
    %v914 = vmul.f32 %v898, %v898
    %v915 = vmul.f32 %v899, %v899
    %v916 = vmul.f32 %v900, %v900
    %v917 = vmul.f32 %v901, %v901
    %v918 = vmul.f32 %v902, 0.080537446
    %v919 = vmul.f32 %v903, 0.080537446
    %v920 = vmul.f32 %v904, 0.080537446
    %v921 = vmul.f32 %v905, 0.080537446
    %v922 = vmul.f32 %v906, 0.080537446
    %v923 = vmul.f32 %v907, 0.080537446
    %v924 = vmul.f32 %v908, 0.080537446
    %v925 = vmul.f32 %v909, 0.080537446
    %v926 = vmul.f32 %v910, 0.080537446
    %v927 = vmul.f32 %v911, 0.080537446
    %v928 = vmul.f32 %v912, 0.080537446
    %v929 = vmul.f32 %v913, 0.080537446
    %v930 = vmul.f32 %v914, 0.080537446
    %v931 = vmul.f32 %v915, 0.080537446
    %v932 = vmul.f32 %v916, 0.080537446
    %v933 = vmul.f32 %v917, 0.080537446
    %v934 = vsub.f32 %v918, 0.13877685
    %v935 = vsub.f32 %v919, 0.13877685
    %v936 = vsub.f32 %v920, 0.13877685
    %v937 = vsub.f32 %v921, 0.13877685
    %v938 = vsub.f32 %v922, 0.13877685
    %v939 = vsub.f32 %v923, 0.13877685
    %v940 = vsub.f32 %v924, 0.13877685
    %v941 = vsub.f32 %v925, 0.13877685
    %v942 = vsub.f32 %v926, 0.13877685
    %v943 = vsub.f32 %v927, 0.13877685
    %v944 = vsub.f32 %v928, 0.13877685
    %v945 = vsub.f32 %v929, 0.13877685
    %v946 = vsub.f32 %v930, 0.13877685
    %v947 = vsub.f32 %v931, 0.13877685
    %v948 = vsub.f32 %v932, 0.13877685
    %v949 = vsub.f32 %v933, 0.13877685
    %v950 = vmul.f32 %v934, %v902
    %v951 = vmul.f32 %v935, %v903
    %v952 = vmul.f32 %v936, %v904
    %v953 = vmul.f32 %v937, %v905
    %v954 = vmul.f32 %v938, %v906
    %v955 = vmul.f32 %v939, %v907
    %v956 = vmul.f32 %v940, %v908
    %v957 = vmul.f32 %v941, %v909
    %v958 = vmul.f32 %v942, %v910
    %v959 = vmul.f32 %v943, %v911
    %v960 = vmul.f32 %v944, %v912
    %v961 = vmul.f32 %v945, %v913
    %v962 = vmul.f32 %v946, %v914
    %v963 = vmul.f32 %v947, %v915
    %v964 = vmul.f32 %v948, %v916
    %v965 = vmul.f32 %v949, %v917
    %v966 = vadd.f32 %v950, 0.19977711
    %v967 = vadd.f32 %v951, 0.19977711
    %v968 = vadd.f32 %v952, 0.19977711
    %v969 = vadd.f32 %v953, 0.19977711
    %v970 = vadd.f32 %v954, 0.19977711
    %v971 = vadd.f32 %v955, 0.19977711
    %v972 = vadd.f32 %v956, 0.19977711
    %v973 = vadd.f32 %v957, 0.19977711
    %v974 = vadd.f32 %v958, 0.19977711
    %v975 = vadd.f32 %v959, 0.19977711
    %v976 = vadd.f32 %v960, 0.19977711
    %v977 = vadd.f32 %v961, 0.19977711
    %v978 = vadd.f32 %v962, 0.19977711
    %v979 = vadd.f32 %v963, 0.19977711
    %v980 = vadd.f32 %v964, 0.19977711
    %v981 = vadd.f32 %v965, 0.19977711
    %v982 = vmul.f32 %v966, %v902
    %v983 = vmul.f32 %v967, %v903
    %v984 = vmul.f32 %v968, %v904
    %v985 = vmul.f32 %v969, %v905
    %v986 = vmul.f32 %v970, %v906
    %v987 = vmul.f32 %v971, %v907
    %v988 = vmul.f32 %v972, %v908
    %v989 = vmul.f32 %v973, %v909
    %v990 = vmul.f32 %v974, %v910
    %v991 = vmul.f32 %v975, %v911
    %v992 = vmul.f32 %v976, %v912
    %v993 = vmul.f32 %v977, %v913
    %v994 = vmul.f32 %v978, %v914
    %v995 = vmul.f32 %v979, %v915
    %v996 = vmul.f32 %v980, %v916
    %v997 = vmul.f32 %v981, %v917
    %v998 = vsub.f32 %v982, 0.3333295
    %v999 = vsub.f32 %v983, 0.3333295
    %v1000 = vsub.f32 %v984, 0.3333295
    %v1001 = vsub.f32 %v985, 0.3333295
    %v1002 = vsub.f32 %v986, 0.3333295
    %v1003 = vsub.f32 %v987, 0.3333295
    %v1004 = vsub.f32 %v988, 0.3333295
    %v1005 = vsub.f32 %v989, 0.3333295
    %v1006 = vsub.f32 %v990, 0.3333295
    %v1007 = vsub.f32 %v991, 0.3333295
    %v1008 = vsub.f32 %v992, 0.3333295
    %v1009 = vsub.f32 %v993, 0.3333295
    %v1010 = vsub.f32 %v994, 0.3333295
    %v1011 = vsub.f32 %v995, 0.3333295
    %v1012 = vsub.f32 %v996, 0.3333295
    %v1013 = vsub.f32 %v997, 0.3333295
    %v1014 = vmul.f32 %v998, %v902
    %v1015 = vmul.f32 %v999, %v903
    %v1016 = vmul.f32 %v1000, %v904
    %v1017 = vmul.f32 %v1001, %v905
    %v1018 = vmul.f32 %v1002, %v906
    %v1019 = vmul.f32 %v1003, %v907
    %v1020 = vmul.f32 %v1004, %v908
    %v1021 = vmul.f32 %v1005, %v909
    %v1022 = vmul.f32 %v1006, %v910
    %v1023 = vmul.f32 %v1007, %v911
    %v1024 = vmul.f32 %v1008, %v912
    %v1025 = vmul.f32 %v1009, %v913
    %v1026 = vmul.f32 %v1010, %v914
    %v1027 = vmul.f32 %v1011, %v915
    %v1028 = vmul.f32 %v1012, %v916
    %v1029 = vmul.f32 %v1013, %v917
    %v1030 = vmul.f32 %v1014, %v886
    %v1031 = vmul.f32 %v1015, %v887
    %v1032 = vmul.f32 %v1016, %v888
    %v1033 = vmul.f32 %v1017, %v889
    %v1034 = vmul.f32 %v1018, %v890
    %v1035 = vmul.f32 %v1019, %v891
    %v1036 = vmul.f32 %v1020, %v892
    %v1037 = vmul.f32 %v1021, %v893
    %v1038 = vmul.f32 %v1022, %v894
    %v1039 = vmul.f32 %v1023, %v895
    %v1040 = vmul.f32 %v1024, %v896
    %v1041 = vmul.f32 %v1025, %v897
    %v1042 = vmul.f32 %v1026, %v898
    %v1043 = vmul.f32 %v1027, %v899
    %v1044 = vmul.f32 %v1028, %v900
    %v1045 = vmul.f32 %v1029, %v901
    %v1046 = vadd.f32 %v1030, %v886
    %v1047 = vadd.f32 %v1031, %v887
    %v1048 = vadd.f32 %v1032, %v888
    %v1049 = vadd.f32 %v1033, %v889
    %v1050 = vadd.f32 %v1034, %v890
    %v1051 = vadd.f32 %v1035, %v891
    %v1052 = vadd.f32 %v1036, %v892
    %v1053 = vadd.f32 %v1037, %v893
    %v1054 = vadd.f32 %v1038, %v894
    %v1055 = vadd.f32 %v1039, %v895
    %v1056 = vadd.f32 %v1040, %v896
    %v1057 = vadd.f32 %v1041, %v897
    %v1058 = vadd.f32 %v1042, %v898
    %v1059 = vadd.f32 %v1043, %v899
    %v1060 = vadd.f32 %v1044, %v900
    %v1061 = vadd.f32 %v1045, %v901
    %v1062 = vadd.f32 %v1046, 0.7853982
    %v1063 = vadd.f32 %v1047, 0.7853982
    %v1064 = vadd.f32 %v1048, 0.7853982
    %v1065 = vadd.f32 %v1049, 0.7853982
    %v1066 = vadd.f32 %v1050, 0.7853982
    %v1067 = vadd.f32 %v1051, 0.7853982
    %v1068 = vadd.f32 %v1052, 0.7853982
    %v1069 = vadd.f32 %v1053, 0.7853982
    %v1070 = vadd.f32 %v1054, 0.7853982
    %v1071 = vadd.f32 %v1055, 0.7853982
    %v1072 = vadd.f32 %v1056, 0.7853982
    %v1073 = vadd.f32 %v1057, 0.7853982
    %v1074 = vadd.f32 %v1058, 0.7853982
    %v1075 = vadd.f32 %v1059, 0.7853982
    %v1076 = vadd.f32 %v1060, 0.7853982
    %v1077 = vadd.f32 %v1061, 0.7853982
    %v1078 = vsel %vm694, %v1062, %v1046
    %v1079 = vsel %vm695, %v1063, %v1047
    %v1080 = vsel %vm696, %v1064, %v1048
    %v1081 = vsel %vm697, %v1065, %v1049
    %v1082 = vsel %vm698, %v1066, %v1050
    %v1083 = vsel %vm699, %v1067, %v1051
    %v1084 = vsel %vm700, %v1068, %v1052
    %v1085 = vsel %vm701, %v1069, %v1053
    %v1086 = vsel %vm702, %v1070, %v1054
    %v1087 = vsel %vm703, %v1071, %v1055
    %v1088 = vsel %vm704, %v1072, %v1056
    %v1089 = vsel %vm705, %v1073, %v1057
    %v1090 = vsel %vm706, %v1074, %v1058
    %v1091 = vsel %vm707, %v1075, %v1059
    %v1092 = vsel %vm708, %v1076, %v1060
    %v1093 = vsel %vm709, %v1077, %v1061
    %vm1094 = vcmp.gt.f32.partialorder %v630, %v614
    %vm1095 = vcmp.gt.f32.partialorder %v631, %v615
    %vm1096 = vcmp.gt.f32.partialorder %v632, %v616
    %vm1097 = vcmp.gt.f32.partialorder %v633, %v617
    %vm1098 = vcmp.gt.f32.partialorder %v634, %v618
    %vm1099 = vcmp.gt.f32.partialorder %v635, %v619
    %vm1100 = vcmp.gt.f32.partialorder %v636, %v620
    %vm1101 = vcmp.gt.f32.partialorder %v637, %v621
    %vm1102 = vcmp.gt.f32.partialorder %v638, %v622
    %vm1103 = vcmp.gt.f32.partialorder %v639, %v623
    %vm1104 = vcmp.gt.f32.partialorder %v640, %v624
    %vm1105 = vcmp.gt.f32.partialorder %v641, %v625
    %vm1106 = vcmp.gt.f32.partialorder %v642, %v626
    %vm1107 = vcmp.gt.f32.partialorder %v643, %v627
    %vm1108 = vcmp.gt.f32.partialorder %v644, %v628
    %vm1109 = vcmp.gt.f32.partialorder %v645, %v629
    %v1110 = vsub.f32 1.5707964, %v1078
    %v1111 = vsub.f32 1.5707964, %v1079
    %v1112 = vsub.f32 1.5707964, %v1080
    %v1113 = vsub.f32 1.5707964, %v1081
    %v1114 = vsub.f32 1.5707964, %v1082
    %v1115 = vsub.f32 1.5707964, %v1083
    %v1116 = vsub.f32 1.5707964, %v1084
    %v1117 = vsub.f32 1.5707964, %v1085
    %v1118 = vsub.f32 1.5707964, %v1086
    %v1119 = vsub.f32 1.5707964, %v1087
    %v1120 = vsub.f32 1.5707964, %v1088
    %v1121 = vsub.f32 1.5707964, %v1089
    %v1122 = vsub.f32 1.5707964, %v1090
    %v1123 = vsub.f32 1.5707964, %v1091
    %v1124 = vsub.f32 1.5707964, %v1092
    %v1125 = vsub.f32 1.5707964, %v1093
    %v1126 = vsel %vm1094, %v1110, %v1078
    %v1127 = vsel %vm1095, %v1111, %v1079
    %v1128 = vsel %vm1096, %v1112, %v1080
    %v1129 = vsel %vm1097, %v1113, %v1081
    %v1130 = vsel %vm1098, %v1114, %v1082
    %v1131 = vsel %vm1099, %v1115, %v1083
    %v1132 = vsel %vm1100, %v1116, %v1084
    %v1133 = vsel %vm1101, %v1117, %v1085
    %v1134 = vsel %vm1102, %v1118, %v1086
    %v1135 = vsel %vm1103, %v1119, %v1087
    %v1136 = vsel %vm1104, %v1120, %v1088
    %v1137 = vsel %vm1105, %v1121, %v1089
    %v1138 = vsel %vm1106, %v1122, %v1090
    %v1139 = vsel %vm1107, %v1123, %v1091
    %v1140 = vsel %vm1108, %v1124, %v1092
    %v1141 = vsel %vm1109, %v1125, %v1093
    %vm1142 = vcmp.lt.f32.partialorder %v582, 0.0
    %vm1143 = vcmp.lt.f32.partialorder %v583, 0.0
    %vm1144 = vcmp.lt.f32.partialorder %v584, 0.0
    %vm1145 = vcmp.lt.f32.partialorder %v585, 0.0
    %vm1146 = vcmp.lt.f32.partialorder %v586, 0.0
    %vm1147 = vcmp.lt.f32.partialorder %v587, 0.0
    %vm1148 = vcmp.lt.f32.partialorder %v588, 0.0
    %vm1149 = vcmp.lt.f32.partialorder %v589, 0.0
    %vm1150 = vcmp.lt.f32.partialorder %v590, 0.0
    %vm1151 = vcmp.lt.f32.partialorder %v591, 0.0
    %vm1152 = vcmp.lt.f32.partialorder %v592, 0.0
    %vm1153 = vcmp.lt.f32.partialorder %v593, 0.0
    %vm1154 = vcmp.lt.f32.partialorder %v594, 0.0
    %vm1155 = vcmp.lt.f32.partialorder %v595, 0.0
    %vm1156 = vcmp.lt.f32.partialorder %v596, 0.0
    %vm1157 = vcmp.lt.f32.partialorder %v597, 0.0
    %v1158 = vsub.f32 3.1415927, %v1126
    %v1159 = vsub.f32 3.1415927, %v1127
    %v1160 = vsub.f32 3.1415927, %v1128
    %v1161 = vsub.f32 3.1415927, %v1129
    %v1162 = vsub.f32 3.1415927, %v1130
    %v1163 = vsub.f32 3.1415927, %v1131
    %v1164 = vsub.f32 3.1415927, %v1132
    %v1165 = vsub.f32 3.1415927, %v1133
    %v1166 = vsub.f32 3.1415927, %v1134
    %v1167 = vsub.f32 3.1415927, %v1135
    %v1168 = vsub.f32 3.1415927, %v1136
    %v1169 = vsub.f32 3.1415927, %v1137
    %v1170 = vsub.f32 3.1415927, %v1138
    %v1171 = vsub.f32 3.1415927, %v1139
    %v1172 = vsub.f32 3.1415927, %v1140
    %v1173 = vsub.f32 3.1415927, %v1141
    %v1174 = vsel %vm1142, %v1158, %v1126
    %v1175 = vsel %vm1143, %v1159, %v1127
    %v1176 = vsel %vm1144, %v1160, %v1128
    %v1177 = vsel %vm1145, %v1161, %v1129
    %v1178 = vsel %vm1146, %v1162, %v1130
    %v1179 = vsel %vm1147, %v1163, %v1131
    %v1180 = vsel %vm1148, %v1164, %v1132
    %v1181 = vsel %vm1149, %v1165, %v1133
    %v1182 = vsel %vm1150, %v1166, %v1134
    %v1183 = vsel %vm1151, %v1167, %v1135
    %v1184 = vsel %vm1152, %v1168, %v1136
    %v1185 = vsel %vm1153, %v1169, %v1137
    %v1186 = vsel %vm1154, %v1170, %v1138
    %v1187 = vsel %vm1155, %v1171, %v1139
    %v1188 = vsel %vm1156, %v1172, %v1140
    %v1189 = vsel %vm1157, %v1173, %v1141
    %vm1190 = vcmp.lt.f32.partialorder %v598, 0.0
    %vm1191 = vcmp.lt.f32.partialorder %v599, 0.0
    %vm1192 = vcmp.lt.f32.partialorder %v600, 0.0
    %vm1193 = vcmp.lt.f32.partialorder %v601, 0.0
    %vm1194 = vcmp.lt.f32.partialorder %v602, 0.0
    %vm1195 = vcmp.lt.f32.partialorder %v603, 0.0
    %vm1196 = vcmp.lt.f32.partialorder %v604, 0.0
    %vm1197 = vcmp.lt.f32.partialorder %v605, 0.0
    %vm1198 = vcmp.lt.f32.partialorder %v606, 0.0
    %vm1199 = vcmp.lt.f32.partialorder %v607, 0.0
    %vm1200 = vcmp.lt.f32.partialorder %v608, 0.0
    %vm1201 = vcmp.lt.f32.partialorder %v609, 0.0
    %vm1202 = vcmp.lt.f32.partialorder %v610, 0.0
    %vm1203 = vcmp.lt.f32.partialorder %v611, 0.0
    %vm1204 = vcmp.lt.f32.partialorder %v612, 0.0
    %vm1205 = vcmp.lt.f32.partialorder %v613, 0.0
    %v1206 = vsub.f32 0.0, %v1174
    %v1207 = vsub.f32 0.0, %v1175
    %v1208 = vsub.f32 0.0, %v1176
    %v1209 = vsub.f32 0.0, %v1177
    %v1210 = vsub.f32 0.0, %v1178
    %v1211 = vsub.f32 0.0, %v1179
    %v1212 = vsub.f32 0.0, %v1180
    %v1213 = vsub.f32 0.0, %v1181
    %v1214 = vsub.f32 0.0, %v1182
    %v1215 = vsub.f32 0.0, %v1183
    %v1216 = vsub.f32 0.0, %v1184
    %v1217 = vsub.f32 0.0, %v1185
    %v1218 = vsub.f32 0.0, %v1186
    %v1219 = vsub.f32 0.0, %v1187
    %v1220 = vsub.f32 0.0, %v1188
    %v1221 = vsub.f32 0.0, %v1189
    %v1222 = vsel %vm1190, %v1206, %v1174
    %v1223 = vsel %vm1191, %v1207, %v1175
    %v1224 = vsel %vm1192, %v1208, %v1176
    %v1225 = vsel %vm1193, %v1209, %v1177
    %v1226 = vsel %vm1194, %v1210, %v1178
    %v1227 = vsel %vm1195, %v1211, %v1179
    %v1228 = vsel %vm1196, %v1212, %v1180
    %v1229 = vsel %vm1197, %v1213, %v1181
    %v1230 = vsel %vm1198, %v1214, %v1182
    %v1231 = vsel %vm1199, %v1215, %v1183
    %v1232 = vsel %vm1200, %v1216, %v1184
    %v1233 = vsel %vm1201, %v1217, %v1185
    %v1234 = vsel %vm1202, %v1218, %v1186
    %v1235 = vsel %vm1203, %v1219, %v1187
    %v1236 = vsel %vm1204, %v1220, %v1188
    %v1237 = vsel %vm1205, %v1221, %v1189
    %v1238 = vld [vmem:[%s56] sm:$0xff]
    %v1239 = vld [vmem:[%s56 + $0x8] sm:$0xff]
    %v1240 = vld [vmem:[%s56 + $0x10] sm:$0xff]
    %v1241 = vld [vmem:[%s56 + $0x18] sm:$0xff]
    %v1242 = vld [vmem:[%s56 + $0x20] sm:$0xff]
    %v1243 = vld [vmem:[%s56 + $0x28] sm:$0xff]
    %v1244 = vld [vmem:[%s56 + $0x30] sm:$0xff]
    %v1245 = vld [vmem:[%s56 + $0x38] sm:$0xff]
    %v1246 = vld [vmem:[%s56 + $0x40] sm:$0xff]
    %v1247 = vld [vmem:[%s56 + $0x48] sm:$0xff]
    %v1248 = vld [vmem:[%s56 + $0x50] sm:$0xff]
    %v1249 = vld [vmem:[%s56 + $0x58] sm:$0xff]
    %v1250 = vld [vmem:[%s56 + $0x60] sm:$0xff]
    %v1251 = vld [vmem:[%s56 + $0x68] sm:$0xff]
    %v1252 = vld [vmem:[%s56 + $0x70] sm:$0xff]
    %v1253 = vld [vmem:[%s56 + $0x78] sm:$0xff]
    %v1255 = vsel %vm115, %v1238, 0
    %v1258 = vsel %vm115, %v1239, 0
    %v1261 = vsel %vm115, %v1240, 0
    %v1264 = vsel %vm115, %v1241, 0
    %v1267 = vsel %vm115, %v1242, 0
    %v1270 = vsel %vm115, %v1243, 0
    %v1273 = vsel %vm115, %v1244, 0
    %v1276 = vsel %vm115, %v1245, 0
    %v1279 = vsel %vm115, %v1246, 0
    %v1282 = vsel %vm115, %v1247, 0
    %v1285 = vsel %vm115, %v1248, 0
    %v1288 = vsel %vm115, %v1249, 0
    %v1291 = vsel %vm115, %v1250, 0
    %v1294 = vsel %vm115, %v1251, 0
    %v1297 = vsel %vm115, %v1252, 0
    %v1300 = vsel %vm115, %v1253, 0
    %1302 = vmatprep.subr.mxu0 %v64
    %1303 = vmatpush1.msra.mxu0 %v63
    %1304 = vmatprep.subr.mxu0 %v66
    %1305 = vmatpush1.msra.mxu0 %v65
    %1306 = vmatprep.subr.mxu0 0.0
    %1307 = vmatpush1.msra.mxu0 0.0
    %1308 = vmatprep.subr.mxu0 0.0
    %1309 = vmatpush1.msra.mxu0 0.0
    %1310 = vmatprep.subr.mxu0 0.0
    %1311 = vmatpush1.msra.mxu0 0.0
    %1312 = vmatprep.subr.mxu0 0.0
    %1313 = vmatpush1.msra.mxu0 0.0
    %1314 = vmatprep.subr.mxu0 0.0
    %1315 = vmatpush1.msra.mxu0 0.0
    %1316 = vmatprep.subr.mxu0 0.0
    %1317 = vmatpush1.msra.mxu0 0.0
    %1318 = vmatprep.subr.mxu0 0.0
    %1319 = vmatpush1.msra.mxu0 0.0
    %1320 = vmatprep.subr.mxu0 0.0
    %1321 = vmatpush1.msra.mxu0 0.0
    %1322 = vmatprep.subr.mxu0 0.0
    %1323 = vmatpush1.msra.mxu0 0.0
    %1324 = vmatprep.subr.mxu0 0.0
    %1325 = vmatpush1.msra.mxu0 0.0
    %1326 = vmatprep.subr.mxu0 0.0
    %1327 = vmatpush1.msra.mxu0 0.0
    %1328 = vmatprep.subr.mxu0 0.0
    %1329 = vmatpush1.msra.mxu0 0.0
    %1330 = vmatprep.subr.mxu0 0.0
    %1331 = vmatpush1.msra.mxu0 0.0
    %1332 = vmatprep.subr.mxu0 0.0
    %1333 = vmatpush1.msra.mxu0 0.0
    %1334 = vmatprep.subr.mxu0 0.0
    %1335 = vmatpush1.msra.mxu0 0.0
    %1336 = vmatprep.subr.mxu0 0.0
    %1337 = vmatpush1.msra.mxu0 0.0
    %1338 = vmatprep.subr.mxu0 0.0
    %1339 = vmatpush1.msra.mxu0 0.0
    %1340 = vmatprep.subr.mxu0 0.0
    %1341 = vmatpush1.msra.mxu0 0.0
    %1342 = vmatprep.subr.mxu0 0.0
    %1343 = vmatpush1.msra.mxu0 0.0
    %1344 = vmatprep.subr.mxu0 0.0
    %1345 = vmatpush1.msra.mxu0 0.0
    %1346 = vmatprep.subr.mxu0 0.0
    %1347 = vmatpush1.msra.mxu0 0.0
    %1348 = vmatprep.subr.mxu0 0.0
    %1349 = vmatpush1.msra.mxu0 0.0
    %1350 = vmatprep.subr.mxu0 0.0
    %1351 = vmatpush1.msra.mxu0 0.0
    %1352 = vmatprep.subr.mxu0 0.0
    %1353 = vmatpush1.msra.mxu0 0.0
    %1354 = vmatprep.subr.mxu0 0.0
    %1355 = vmatpush1.msra.mxu0 0.0
    %1356 = vmatprep.subr.mxu0 0.0
    %1357 = vmatpush1.msra.mxu0 0.0
    %1358 = vmatprep.subr.mxu0 0.0
    %1359 = vmatpush1.msra.mxu0 0.0
    %1360 = vmatprep.subr.mxu0 0.0
    %1361 = vmatpush1.msra.mxu0 0.0
    %1362 = vmatprep.subr.mxu0 0.0
    %1363 = vmatpush1.msra.mxu0 0.0
    %1364 = vmatprep.subr.mxu0 0.0
    %1365 = vmatpush1.msra.mxu0 0.0
    %1366 = vmatprep.mubr.f32.mxu0 0.0
    %1367 = vmatmul.mubr.f32.gmra.mrb[0].mxu0 %v1255
    %v1368 = vpop.f32.mrb[0].mxu0
    %v1369 = vadd.f32 0.0, %v1368
    %v1370 = vpop.f32.mrb[0].mxu0
    %v1371 = vadd.f32 0.0, %v1370
    %1372 = vmatprep.mubr.f32.mxu0 0.0
    %1373 = vmatmul.mubr.f32.gmra.mrb[0].mxu0 %v1258
    %v1374 = vpop.f32.mrb[0].mxu0
    %v1375 = vadd.f32 0.0, %v1374
    %v1376 = vpop.f32.mrb[0].mxu0
    %v1377 = vadd.f32 0.0, %v1376
    %1378 = vmatprep.mubr.f32.mxu0 0.0
    %1379 = vmatmul.mubr.f32.gmra.mrb[0].mxu0 %v1261
    %v1380 = vpop.f32.mrb[0].mxu0
    %v1381 = vadd.f32 0.0, %v1380
    %v1382 = vpop.f32.mrb[0].mxu0
    %v1383 = vadd.f32 0.0, %v1382
    %1384 = vmatprep.mubr.f32.mxu0 0.0
    %1385 = vmatmul.mubr.f32.gmra.mrb[0].mxu0 %v1264
    %v1386 = vpop.f32.mrb[0].mxu0
    %v1387 = vadd.f32 0.0, %v1386
    %v1388 = vpop.f32.mrb[0].mxu0
    %v1389 = vadd.f32 0.0, %v1388
    %1390 = vmatprep.mubr.f32.mxu0 0.0
    %1391 = vmatmul.mubr.f32.gmra.mrb[0].mxu0 %v1267
    %v1392 = vpop.f32.mrb[0].mxu0
    %v1393 = vadd.f32 0.0, %v1392
    %v1394 = vpop.f32.mrb[0].mxu0
    %v1395 = vadd.f32 0.0, %v1394
    %1396 = vmatprep.mubr.f32.mxu0 0.0
    %1397 = vmatmul.mubr.f32.gmra.mrb[0].mxu0 %v1270
    %v1398 = vpop.f32.mrb[0].mxu0
    %v1399 = vadd.f32 0.0, %v1398
    %v1400 = vpop.f32.mrb[0].mxu0
    %v1401 = vadd.f32 0.0, %v1400
    %1402 = vmatprep.mubr.f32.mxu0 0.0
    %1403 = vmatmul.mubr.f32.gmra.mrb[0].mxu0 %v1273
    %v1404 = vpop.f32.mrb[0].mxu0
    %v1405 = vadd.f32 0.0, %v1404
    %v1406 = vpop.f32.mrb[0].mxu0
    %v1407 = vadd.f32 0.0, %v1406
    %1408 = vmatprep.mubr.f32.mxu0 0.0
    %1409 = vmatmul.mubr.f32.gmra.mrb[0].mxu0 %v1276
    %v1410 = vpop.f32.mrb[0].mxu0
    %v1411 = vadd.f32 0.0, %v1410
    %v1412 = vpop.f32.mrb[0].mxu0
    %v1413 = vadd.f32 0.0, %v1412
    %1414 = vmatprep.mubr.f32.mxu0 0.0
    %1415 = vmatmul.mubr.f32.gmra.mrb[0].mxu0 %v1279
    %v1416 = vpop.f32.mrb[0].mxu0
    %v1417 = vadd.f32 0.0, %v1416
    %v1418 = vpop.f32.mrb[0].mxu0
    %v1419 = vadd.f32 0.0, %v1418
    %1420 = vmatprep.mubr.f32.mxu0 0.0
    %1421 = vmatmul.mubr.f32.gmra.mrb[0].mxu0 %v1282
    %v1422 = vpop.f32.mrb[0].mxu0
    %v1423 = vadd.f32 0.0, %v1422
    %v1424 = vpop.f32.mrb[0].mxu0
    %v1425 = vadd.f32 0.0, %v1424
    %1426 = vmatprep.mubr.f32.mxu0 0.0
    %1427 = vmatmul.mubr.f32.gmra.mrb[0].mxu0 %v1285
    %v1428 = vpop.f32.mrb[0].mxu0
    %v1429 = vadd.f32 0.0, %v1428
    %v1430 = vpop.f32.mrb[0].mxu0
    %v1431 = vadd.f32 0.0, %v1430
    %1432 = vmatprep.mubr.f32.mxu0 0.0
    %1433 = vmatmul.mubr.f32.gmra.mrb[0].mxu0 %v1288
    %v1434 = vpop.f32.mrb[0].mxu0
    %v1435 = vadd.f32 0.0, %v1434
    %v1436 = vpop.f32.mrb[0].mxu0
    %v1437 = vadd.f32 0.0, %v1436
    %1438 = vmatprep.mubr.f32.mxu0 0.0
    %1439 = vmatmul.mubr.f32.gmra.mrb[0].mxu0 %v1291
    %v1440 = vpop.f32.mrb[0].mxu0
    %v1441 = vadd.f32 0.0, %v1440
    %v1442 = vpop.f32.mrb[0].mxu0
    %v1443 = vadd.f32 0.0, %v1442
    %1444 = vmatprep.mubr.f32.mxu0 0.0
    %1445 = vmatmul.mubr.f32.gmra.mrb[0].mxu0 %v1294
    %v1446 = vpop.f32.mrb[0].mxu0
    %v1447 = vadd.f32 0.0, %v1446
    %v1448 = vpop.f32.mrb[0].mxu0
    %v1449 = vadd.f32 0.0, %v1448
    %1450 = vmatprep.mubr.f32.mxu0 0.0
    %1451 = vmatmul.mubr.f32.gmra.mrb[0].mxu0 %v1297
    %v1452 = vpop.f32.mrb[0].mxu0
    %v1453 = vadd.f32 0.0, %v1452
    %v1454 = vpop.f32.mrb[0].mxu0
    %v1455 = vadd.f32 0.0, %v1454
    %1456 = vmatprep.mubr.f32.mxu0 0.0
    %1457 = vmatmul.mubr.f32.gmra.mrb[0].mxu0 %v1300
    %v1458 = vpop.f32.mrb[0].mxu0
    %v1459 = vadd.f32 0.0, %v1458
    %v1460 = vpop.f32.mrb[0].mxu0
    %v1461 = vadd.f32 0.0, %v1460
    %1462 = vdwg.mxu0
    %1463 = vmatprep.subr.mxu0 %v1371
    %1464 = vmatpush1.msra.mxu0 %v1369
    %1465 = vmatprep.subr.mxu0 %v1377
    %1466 = vmatpush1.msra.mxu0 %v1375
    %1467 = vmatprep.subr.mxu0 %v1383
    %1468 = vmatpush1.msra.mxu0 %v1381
    %1469 = vmatprep.subr.mxu0 %v1389
    %1470 = vmatpush1.msra.mxu0 %v1387
    %1471 = vmatprep.subr.mxu0 %v1395
    %1472 = vmatpush1.msra.mxu0 %v1393
    %1473 = vmatprep.subr.mxu0 %v1401
    %1474 = vmatpush1.msra.mxu0 %v1399
    %1475 = vmatprep.subr.mxu0 %v1407
    %1476 = vmatpush1.msra.mxu0 %v1405
    %1477 = vmatprep.subr.mxu0 %v1413
    %1478 = vmatpush1.msra.mxu0 %v1411
    %1479 = vmatprep.subr.mxu0 %v1419
    %1480 = vmatpush1.msra.mxu0 %v1417
    %1481 = vmatprep.subr.mxu0 %v1425
    %1482 = vmatpush1.msra.mxu0 %v1423
    %1483 = vmatprep.subr.mxu0 %v1431
    %1484 = vmatpush1.msra.mxu0 %v1429
    %1485 = vmatprep.subr.mxu0 %v1437
    %1486 = vmatpush1.msra.mxu0 %v1435
    %1487 = vmatprep.subr.mxu0 %v1443
    %1488 = vmatpush1.msra.mxu0 %v1441
    %1489 = vmatprep.subr.mxu0 %v1449
    %1490 = vmatpush1.msra.mxu0 %v1447
    %1491 = vmatprep.subr.mxu0 %v1455
    %1492 = vmatpush1.msra.mxu0 %v1453
    %1493 = vmatprep.subr.mxu0 %v1461
    %1494 = vmatpush1.msra.mxu0 %v1459
    %1495 = vmatprep.subr.mxu0 0.0
    %1496 = vmatpush1.msra.mxu0 0.0
    %1497 = vmatprep.subr.mxu0 0.0
    %1498 = vmatpush1.msra.mxu0 0.0
    %1499 = vmatprep.subr.mxu0 0.0
    %1500 = vmatpush1.msra.mxu0 0.0
    %1501 = vmatprep.subr.mxu0 0.0
    %1502 = vmatpush1.msra.mxu0 0.0
    %1503 = vmatprep.subr.mxu0 0.0
    %1504 = vmatpush1.msra.mxu0 0.0
    %1505 = vmatprep.subr.mxu0 0.0
    %1506 = vmatpush1.msra.mxu0 0.0
    %1507 = vmatprep.subr.mxu0 0.0
    %1508 = vmatpush1.msra.mxu0 0.0
    %1509 = vmatprep.subr.mxu0 0.0
    %1510 = vmatpush1.msra.mxu0 0.0
    %1511 = vmatprep.subr.mxu0 0.0
    %1512 = vmatpush1.msra.mxu0 0.0
    %1513 = vmatprep.subr.mxu0 0.0
    %1514 = vmatpush1.msra.mxu0 0.0
    %1515 = vmatprep.subr.mxu0 0.0
    %1516 = vmatpush1.msra.mxu0 0.0
    %1517 = vmatprep.subr.mxu0 0.0
    %1518 = vmatpush1.msra.mxu0 0.0
    %1519 = vmatprep.subr.mxu0 0.0
    %1520 = vmatpush1.msra.mxu0 0.0
    %1521 = vmatprep.subr.mxu0 0.0
    %1522 = vmatpush1.msra.mxu0 0.0
    %1523 = vmatprep.subr.mxu0 0.0
    %1524 = vmatpush1.msra.mxu0 0.0
    %1525 = vmatprep.subr.mxu0 0.0
    %1526 = vmatpush1.msra.mxu0 0.0
    %1527 = vmatprep.mubr.f32.mxu0 0.0
    %1528 = vmatmul.mubr.f32.gmra.mrb[0].mxu0 %v67
    %v1529 = vpop.f32.mrb[0].mxu0
    %v1530 = vadd.f32 0.0, %v1529
    %v1531 = vpop.f32.mrb[0].mxu0
    %v1532 = vadd.f32 0.0, %v1531
    %1533 = vmatprep.mubr.f32.mxu0 0.0
    %1534 = vmatmul.mubr.f32.gmra.mrb[0].mxu0 %v68
    %v1535 = vpop.f32.mrb[0].mxu0
    %v1536 = vadd.f32 0.0, %v1535
    %v1537 = vpop.f32.mrb[0].mxu0
    %v1538 = vadd.f32 0.0, %v1537
    %1539 = vmatprep.mubr.f32.mxu0 0.0
    %1540 = vmatmul.mubr.f32.gmra.mrb[0].mxu0 %v69
    %v1541 = vpop.f32.mrb[0].mxu0
    %v1542 = vadd.f32 0.0, %v1541
    %v1543 = vpop.f32.mrb[0].mxu0
    %v1544 = vadd.f32 0.0, %v1543
    %1545 = vmatprep.mubr.f32.mxu0 0.0
    %1546 = vmatmul.mubr.f32.gmra.mrb[0].mxu0 %v70
    %v1547 = vpop.f32.mrb[0].mxu0
    %v1548 = vadd.f32 0.0, %v1547
    %v1549 = vpop.f32.mrb[0].mxu0
    %v1550 = vadd.f32 0.0, %v1549
    %1551 = vmatprep.mubr.f32.mxu0 0.0
    %1552 = vmatmul.mubr.f32.gmra.mrb[0].mxu0 %v71
    %v1553 = vpop.f32.mrb[0].mxu0
    %v1554 = vadd.f32 0.0, %v1553
    %v1555 = vpop.f32.mrb[0].mxu0
    %v1556 = vadd.f32 0.0, %v1555
    %1557 = vmatprep.mubr.f32.mxu0 0.0
    %1558 = vmatmul.mubr.f32.gmra.mrb[0].mxu0 %v72
    %v1559 = vpop.f32.mrb[0].mxu0
    %v1560 = vadd.f32 0.0, %v1559
    %v1561 = vpop.f32.mrb[0].mxu0
    %v1562 = vadd.f32 0.0, %v1561
    %1563 = vmatprep.mubr.f32.mxu0 0.0
    %1564 = vmatmul.mubr.f32.gmra.mrb[0].mxu0 %v73
    %v1565 = vpop.f32.mrb[0].mxu0
    %v1566 = vadd.f32 0.0, %v1565
    %v1567 = vpop.f32.mrb[0].mxu0
    %v1568 = vadd.f32 0.0, %v1567
    %1569 = vmatprep.mubr.f32.mxu0 0.0
    %1570 = vmatmul.mubr.f32.gmra.mrb[0].mxu0 %v74
    %v1571 = vpop.f32.mrb[0].mxu0
    %v1572 = vadd.f32 0.0, %v1571
    %v1573 = vpop.f32.mrb[0].mxu0
    %v1574 = vadd.f32 0.0, %v1573
    %1575 = vmatprep.mubr.f32.mxu0 0.0
    %1576 = vmatmul.mubr.f32.gmra.mrb[0].mxu0 %v75
    %v1577 = vpop.f32.mrb[0].mxu0
    %v1578 = vadd.f32 0.0, %v1577
    %v1579 = vpop.f32.mrb[0].mxu0
    %v1580 = vadd.f32 0.0, %v1579
    %1581 = vmatprep.mubr.f32.mxu0 0.0
    %1582 = vmatmul.mubr.f32.gmra.mrb[0].mxu0 %v76
    %v1583 = vpop.f32.mrb[0].mxu0
    %v1584 = vadd.f32 0.0, %v1583
    %v1585 = vpop.f32.mrb[0].mxu0
    %v1586 = vadd.f32 0.0, %v1585
    %1587 = vmatprep.mubr.f32.mxu0 0.0
    %1588 = vmatmul.mubr.f32.gmra.mrb[0].mxu0 %v77
    %v1589 = vpop.f32.mrb[0].mxu0
    %v1590 = vadd.f32 0.0, %v1589
    %v1591 = vpop.f32.mrb[0].mxu0
    %v1592 = vadd.f32 0.0, %v1591
    %1593 = vmatprep.mubr.f32.mxu0 0.0
    %1594 = vmatmul.mubr.f32.gmra.mrb[0].mxu0 %v78
    %v1595 = vpop.f32.mrb[0].mxu0
    %v1596 = vadd.f32 0.0, %v1595
    %v1597 = vpop.f32.mrb[0].mxu0
    %v1598 = vadd.f32 0.0, %v1597
    %1599 = vmatprep.mubr.f32.mxu0 0.0
    %1600 = vmatmul.mubr.f32.gmra.mrb[0].mxu0 %v79
    %v1601 = vpop.f32.mrb[0].mxu0
    %v1602 = vadd.f32 0.0, %v1601
    %v1603 = vpop.f32.mrb[0].mxu0
    %v1604 = vadd.f32 0.0, %v1603
    %1605 = vmatprep.mubr.f32.mxu0 0.0
    %1606 = vmatmul.mubr.f32.gmra.mrb[0].mxu0 %v80
    %v1607 = vpop.f32.mrb[0].mxu0
    %v1608 = vadd.f32 0.0, %v1607
    %v1609 = vpop.f32.mrb[0].mxu0
    %v1610 = vadd.f32 0.0, %v1609
    %1611 = vmatprep.mubr.f32.mxu0 0.0
    %1612 = vmatmul.mubr.f32.gmra.mrb[0].mxu0 %v81
    %v1613 = vpop.f32.mrb[0].mxu0
    %v1614 = vadd.f32 0.0, %v1613
    %v1615 = vpop.f32.mrb[0].mxu0
    %v1616 = vadd.f32 0.0, %v1615
    %1617 = vmatprep.mubr.f32.mxu0 0.0
    %1618 = vmatmul.mubr.f32.gmra.mrb[0].mxu0 %v82
    %v1619 = vpop.f32.mrb[0].mxu0
    %v1620 = vadd.f32 0.0, %v1619
    %v1621 = vpop.f32.mrb[0].mxu0
    %v1622 = vadd.f32 0.0, %v1621
    %1623 = vmatprep.mubr.f32.mxu0 0.0
    %1624 = vmatmul.mubr.f32.gmra.mrb[0].mxu0 %v83
    %v1625 = vpop.f32.mrb[0].mxu0
    %v1626 = vadd.f32 0.0, %v1625
    %v1627 = vpop.f32.mrb[0].mxu0
    %v1628 = vadd.f32 0.0, %v1627
    %1629 = vmatprep.mubr.f32.mxu0 0.0
    %1630 = vmatmul.mubr.f32.gmra.mrb[0].mxu0 %v84
    %v1631 = vpop.f32.mrb[0].mxu0
    %v1632 = vadd.f32 0.0, %v1631
    %v1633 = vpop.f32.mrb[0].mxu0
    %v1634 = vadd.f32 0.0, %v1633
    %1635 = vmatprep.mubr.f32.mxu0 0.0
    %1636 = vmatmul.mubr.f32.gmra.mrb[0].mxu0 %v85
    %v1637 = vpop.f32.mrb[0].mxu0
    %v1638 = vadd.f32 0.0, %v1637
    %v1639 = vpop.f32.mrb[0].mxu0
    %v1640 = vadd.f32 0.0, %v1639
    %1641 = vmatprep.mubr.f32.mxu0 0.0
    %1642 = vmatmul.mubr.f32.gmra.mrb[0].mxu0 %v86
    %v1643 = vpop.f32.mrb[0].mxu0
    %v1644 = vadd.f32 0.0, %v1643
    %v1645 = vpop.f32.mrb[0].mxu0
    %v1646 = vadd.f32 0.0, %v1645
    %1647 = vmatprep.mubr.f32.mxu0 0.0
    %1648 = vmatmul.mubr.f32.gmra.mrb[0].mxu0 %v87
    %v1649 = vpop.f32.mrb[0].mxu0
    %v1650 = vadd.f32 0.0, %v1649
    %v1651 = vpop.f32.mrb[0].mxu0
    %v1652 = vadd.f32 0.0, %v1651
    %1653 = vmatprep.mubr.f32.mxu0 0.0
    %1654 = vmatmul.mubr.f32.gmra.mrb[0].mxu0 %v88
    %v1655 = vpop.f32.mrb[0].mxu0
    %v1656 = vadd.f32 0.0, %v1655
    %v1657 = vpop.f32.mrb[0].mxu0
    %v1658 = vadd.f32 0.0, %v1657
    %1659 = vmatprep.mubr.f32.mxu0 0.0
    %1660 = vmatmul.mubr.f32.gmra.mrb[0].mxu0 %v89
    %v1661 = vpop.f32.mrb[0].mxu0
    %v1662 = vadd.f32 0.0, %v1661
    %v1663 = vpop.f32.mrb[0].mxu0
    %v1664 = vadd.f32 0.0, %v1663
    %1665 = vmatprep.mubr.f32.mxu0 0.0
    %1666 = vmatmul.mubr.f32.gmra.mrb[0].mxu0 %v90
    %v1667 = vpop.f32.mrb[0].mxu0
    %v1668 = vadd.f32 0.0, %v1667
    %v1669 = vpop.f32.mrb[0].mxu0
    %v1670 = vadd.f32 0.0, %v1669
    %1671 = vmatprep.mubr.f32.mxu0 0.0
    %1672 = vmatmul.mubr.f32.gmra.mrb[0].mxu0 %v91
    %v1673 = vpop.f32.mrb[0].mxu0
    %v1674 = vadd.f32 0.0, %v1673
    %v1675 = vpop.f32.mrb[0].mxu0
    %v1676 = vadd.f32 0.0, %v1675
    %1677 = vmatprep.mubr.f32.mxu0 0.0
    %1678 = vmatmul.mubr.f32.gmra.mrb[0].mxu0 %v92
    %v1679 = vpop.f32.mrb[0].mxu0
    %v1680 = vadd.f32 0.0, %v1679
    %v1681 = vpop.f32.mrb[0].mxu0
    %v1682 = vadd.f32 0.0, %v1681
    %1683 = vmatprep.mubr.f32.mxu0 0.0
    %1684 = vmatmul.mubr.f32.gmra.mrb[0].mxu0 %v93
    %v1685 = vpop.f32.mrb[0].mxu0
    %v1686 = vadd.f32 0.0, %v1685
    %v1687 = vpop.f32.mrb[0].mxu0
    %v1688 = vadd.f32 0.0, %v1687
    %1689 = vmatprep.mubr.f32.mxu0 0.0
    %1690 = vmatmul.mubr.f32.gmra.mrb[0].mxu0 %v94
    %v1691 = vpop.f32.mrb[0].mxu0
    %v1692 = vadd.f32 0.0, %v1691
    %v1693 = vpop.f32.mrb[0].mxu0
    %v1694 = vadd.f32 0.0, %v1693
    %1695 = vmatprep.mubr.f32.mxu0 0.0
    %1696 = vmatmul.mubr.f32.gmra.mrb[0].mxu0 %v95
    %v1697 = vpop.f32.mrb[0].mxu0
    %v1698 = vadd.f32 0.0, %v1697
    %v1699 = vpop.f32.mrb[0].mxu0
    %v1700 = vadd.f32 0.0, %v1699
    %1701 = vmatprep.mubr.f32.mxu0 0.0
    %1702 = vmatmul.mubr.f32.gmra.mrb[0].mxu0 %v96
    %v1703 = vpop.f32.mrb[0].mxu0
    %v1704 = vadd.f32 0.0, %v1703
    %v1705 = vpop.f32.mrb[0].mxu0
    %v1706 = vadd.f32 0.0, %v1705
    %1707 = vmatprep.mubr.f32.mxu0 0.0
    %1708 = vmatmul.mubr.f32.gmra.mrb[0].mxu0 %v97
    %v1709 = vpop.f32.mrb[0].mxu0
    %v1710 = vadd.f32 0.0, %v1709
    %v1711 = vpop.f32.mrb[0].mxu0
    %v1712 = vadd.f32 0.0, %v1711
    %1713 = vmatprep.mubr.f32.mxu0 0.0
    %1714 = vmatmul.mubr.f32.gmra.mrb[0].mxu0 %v98
    %v1715 = vpop.f32.mrb[0].mxu0
    %v1716 = vadd.f32 0.0, %v1715
    %v1717 = vpop.f32.mrb[0].mxu0
    %v1718 = vadd.f32 0.0, %v1717
    %1719 = vdwg.mxu0
    %v1720 = vsub.f32 %v1530, %v1628
    %v1721 = vsub.f32 %v1536, %v1634
    %v1722 = vsub.f32 %v1542, %v1640
    %v1723 = vsub.f32 %v1548, %v1646
    %v1724 = vsub.f32 %v1554, %v1652
    %v1725 = vsub.f32 %v1560, %v1658
    %v1726 = vsub.f32 %v1566, %v1664
    %v1727 = vsub.f32 %v1572, %v1670
    %v1728 = vsub.f32 %v1578, %v1676
    %v1729 = vsub.f32 %v1584, %v1682
    %v1730 = vsub.f32 %v1590, %v1688
    %v1731 = vsub.f32 %v1596, %v1694
    %v1732 = vsub.f32 %v1602, %v1700
    %v1733 = vsub.f32 %v1608, %v1706
    %v1734 = vsub.f32 %v1614, %v1712
    %v1735 = vsub.f32 %v1620, %v1718
    %v1736 = vadd.f32 %v1532, %v1626
    %v1737 = vadd.f32 %v1538, %v1632
    %v1738 = vadd.f32 %v1544, %v1638
    %v1739 = vadd.f32 %v1550, %v1644
    %v1740 = vadd.f32 %v1556, %v1650
    %v1741 = vadd.f32 %v1562, %v1656
    %v1742 = vadd.f32 %v1568, %v1662
    %v1743 = vadd.f32 %v1574, %v1668
    %v1744 = vadd.f32 %v1580, %v1674
    %v1745 = vadd.f32 %v1586, %v1680
    %v1746 = vadd.f32 %v1592, %v1686
    %v1747 = vadd.f32 %v1598, %v1692
    %v1748 = vadd.f32 %v1604, %v1698
    %v1749 = vadd.f32 %v1610, %v1704
    %v1750 = vadd.f32 %v1616, %v1710
    %v1751 = vadd.f32 %v1622, %v1716
    %v1752 = vand.u32 2147483647, %v1720
    %v1753 = vand.u32 2147483647, %v1721
    %v1754 = vand.u32 2147483647, %v1722
    %v1755 = vand.u32 2147483647, %v1723
    %v1756 = vand.u32 2147483647, %v1724
    %v1757 = vand.u32 2147483647, %v1725
    %v1758 = vand.u32 2147483647, %v1726
    %v1759 = vand.u32 2147483647, %v1727
    %v1760 = vand.u32 2147483647, %v1728
    %v1761 = vand.u32 2147483647, %v1729
    %v1762 = vand.u32 2147483647, %v1730
    %v1763 = vand.u32 2147483647, %v1731
    %v1764 = vand.u32 2147483647, %v1732
    %v1765 = vand.u32 2147483647, %v1733
    %v1766 = vand.u32 2147483647, %v1734
    %v1767 = vand.u32 2147483647, %v1735
    %v1768 = vand.u32 2147483647, %v1736
    %v1769 = vand.u32 2147483647, %v1737
    %v1770 = vand.u32 2147483647, %v1738
    %v1771 = vand.u32 2147483647, %v1739
    %v1772 = vand.u32 2147483647, %v1740
    %v1773 = vand.u32 2147483647, %v1741
    %v1774 = vand.u32 2147483647, %v1742
    %v1775 = vand.u32 2147483647, %v1743
    %v1776 = vand.u32 2147483647, %v1744
    %v1777 = vand.u32 2147483647, %v1745
    %v1778 = vand.u32 2147483647, %v1746
    %v1779 = vand.u32 2147483647, %v1747
    %v1780 = vand.u32 2147483647, %v1748
    %v1781 = vand.u32 2147483647, %v1749
    %v1782 = vand.u32 2147483647, %v1750
    %v1783 = vand.u32 2147483647, %v1751
    %v1784 = vmax.f32 %v1752, %v1768
    %v1785 = vmax.f32 %v1753, %v1769
    %v1786 = vmax.f32 %v1754, %v1770
    %v1787 = vmax.f32 %v1755, %v1771
    %v1788 = vmax.f32 %v1756, %v1772
    %v1789 = vmax.f32 %v1757, %v1773
    %v1790 = vmax.f32 %v1758, %v1774
    %v1791 = vmax.f32 %v1759, %v1775
    %v1792 = vmax.f32 %v1760, %v1776
    %v1793 = vmax.f32 %v1761, %v1777
    %v1794 = vmax.f32 %v1762, %v1778
    %v1795 = vmax.f32 %v1763, %v1779
    %v1796 = vmax.f32 %v1764, %v1780
    %v1797 = vmax.f32 %v1765, %v1781
    %v1798 = vmax.f32 %v1766, %v1782
    %v1799 = vmax.f32 %v1767, %v1783
    %v1800 = vmin.f32 %v1752, %v1768
    %v1801 = vmin.f32 %v1753, %v1769
    %v1802 = vmin.f32 %v1754, %v1770
    %v1803 = vmin.f32 %v1755, %v1771
    %v1804 = vmin.f32 %v1756, %v1772
    %v1805 = vmin.f32 %v1757, %v1773
    %v1806 = vmin.f32 %v1758, %v1774
    %v1807 = vmin.f32 %v1759, %v1775
    %v1808 = vmin.f32 %v1760, %v1776
    %v1809 = vmin.f32 %v1761, %v1777
    %v1810 = vmin.f32 %v1762, %v1778
    %v1811 = vmin.f32 %v1763, %v1779
    %v1812 = vmin.f32 %v1764, %v1780
    %v1813 = vmin.f32 %v1765, %v1781
    %v1814 = vmin.f32 %v1766, %v1782
    %v1815 = vmin.f32 %v1767, %v1783
    %v1816 = vmul.f32 %v1784, 0.41421357
    %v1817 = vmul.f32 %v1785, 0.41421357
    %v1818 = vmul.f32 %v1786, 0.41421357
    %v1819 = vmul.f32 %v1787, 0.41421357
    %v1820 = vmul.f32 %v1788, 0.41421357
    %v1821 = vmul.f32 %v1789, 0.41421357
    %v1822 = vmul.f32 %v1790, 0.41421357
    %v1823 = vmul.f32 %v1791, 0.41421357
    %v1824 = vmul.f32 %v1792, 0.41421357
    %v1825 = vmul.f32 %v1793, 0.41421357
    %v1826 = vmul.f32 %v1794, 0.41421357
    %v1827 = vmul.f32 %v1795, 0.41421357
    %v1828 = vmul.f32 %v1796, 0.41421357
    %v1829 = vmul.f32 %v1797, 0.41421357
    %v1830 = vmul.f32 %v1798, 0.41421357
    %v1831 = vmul.f32 %v1799, 0.41421357
    %vm1832 = vcmp.gt.f32.partialorder %v1800, %v1816
    %vm1833 = vcmp.gt.f32.partialorder %v1801, %v1817
    %vm1834 = vcmp.gt.f32.partialorder %v1802, %v1818
    %vm1835 = vcmp.gt.f32.partialorder %v1803, %v1819
    %vm1836 = vcmp.gt.f32.partialorder %v1804, %v1820
    %vm1837 = vcmp.gt.f32.partialorder %v1805, %v1821
    %vm1838 = vcmp.gt.f32.partialorder %v1806, %v1822
    %vm1839 = vcmp.gt.f32.partialorder %v1807, %v1823
    %vm1840 = vcmp.gt.f32.partialorder %v1808, %v1824
    %vm1841 = vcmp.gt.f32.partialorder %v1809, %v1825
    %vm1842 = vcmp.gt.f32.partialorder %v1810, %v1826
    %vm1843 = vcmp.gt.f32.partialorder %v1811, %v1827
    %vm1844 = vcmp.gt.f32.partialorder %v1812, %v1828
    %vm1845 = vcmp.gt.f32.partialorder %v1813, %v1829
    %vm1846 = vcmp.gt.f32.partialorder %v1814, %v1830
    %vm1847 = vcmp.gt.f32.partialorder %v1815, %v1831
    %v1848 = vsub.f32 %v1800, %v1784
    %v1849 = vsub.f32 %v1801, %v1785
    %v1850 = vsub.f32 %v1802, %v1786
    %v1851 = vsub.f32 %v1803, %v1787
    %v1852 = vsub.f32 %v1804, %v1788
    %v1853 = vsub.f32 %v1805, %v1789
    %v1854 = vsub.f32 %v1806, %v1790
    %v1855 = vsub.f32 %v1807, %v1791
    %v1856 = vsub.f32 %v1808, %v1792
    %v1857 = vsub.f32 %v1809, %v1793
    %v1858 = vsub.f32 %v1810, %v1794
    %v1859 = vsub.f32 %v1811, %v1795
    %v1860 = vsub.f32 %v1812, %v1796
    %v1861 = vsub.f32 %v1813, %v1797
    %v1862 = vsub.f32 %v1814, %v1798
    %v1863 = vsub.f32 %v1815, %v1799
    %v1864 = vsel %vm1832, %v1848, %v1800
    %v1865 = vsel %vm1833, %v1849, %v1801
    %v1866 = vsel %vm1834, %v1850, %v1802
    %v1867 = vsel %vm1835, %v1851, %v1803
    %v1868 = vsel %vm1836, %v1852, %v1804
    %v1869 = vsel %vm1837, %v1853, %v1805
    %v1870 = vsel %vm1838, %v1854, %v1806
    %v1871 = vsel %vm1839, %v1855, %v1807
    %v1872 = vsel %vm1840, %v1856, %v1808
    %v1873 = vsel %vm1841, %v1857, %v1809
    %v1874 = vsel %vm1842, %v1858, %v1810
    %v1875 = vsel %vm1843, %v1859, %v1811
    %v1876 = vsel %vm1844, %v1860, %v1812
    %v1877 = vsel %vm1845, %v1861, %v1813
    %v1878 = vsel %vm1846, %v1862, %v1814
    %v1879 = vsel %vm1847, %v1863, %v1815
    %v1880 = vadd.f32 %v1800, %v1784
    %v1881 = vadd.f32 %v1801, %v1785
    %v1882 = vadd.f32 %v1802, %v1786
    %v1883 = vadd.f32 %v1803, %v1787
    %v1884 = vadd.f32 %v1804, %v1788
    %v1885 = vadd.f32 %v1805, %v1789
    %v1886 = vadd.f32 %v1806, %v1790
    %v1887 = vadd.f32 %v1807, %v1791
    %v1888 = vadd.f32 %v1808, %v1792
    %v1889 = vadd.f32 %v1809, %v1793
    %v1890 = vadd.f32 %v1810, %v1794
    %v1891 = vadd.f32 %v1811, %v1795
    %v1892 = vadd.f32 %v1812, %v1796
    %v1893 = vadd.f32 %v1813, %v1797
    %v1894 = vadd.f32 %v1814, %v1798
    %v1895 = vadd.f32 %v1815, %v1799
    %v1896 = vsel %vm1832, %v1880, %v1784
    %v1897 = vsel %vm1833, %v1881, %v1785
    %v1898 = vsel %vm1834, %v1882, %v1786
    %v1899 = vsel %vm1835, %v1883, %v1787
    %v1900 = vsel %vm1836, %v1884, %v1788
    %v1901 = vsel %vm1837, %v1885, %v1789
    %v1902 = vsel %vm1838, %v1886, %v1790
    %v1903 = vsel %vm1839, %v1887, %v1791
    %v1904 = vsel %vm1840, %v1888, %v1792
    %v1905 = vsel %vm1841, %v1889, %v1793
    %v1906 = vsel %vm1842, %v1890, %v1794
    %v1907 = vsel %vm1843, %v1891, %v1795
    %v1908 = vsel %vm1844, %v1892, %v1796
    %v1909 = vsel %vm1845, %v1893, %v1797
    %v1910 = vsel %vm1846, %v1894, %v1798
    %v1911 = vsel %vm1847, %v1895, %v1799
    %vm1912 = vcmp.gt.f32.partialorder %v1896, 0.0
    %vm1913 = vcmp.gt.f32.partialorder %v1897, 0.0
    %vm1914 = vcmp.gt.f32.partialorder %v1898, 0.0
    %vm1915 = vcmp.gt.f32.partialorder %v1899, 0.0
    %vm1916 = vcmp.gt.f32.partialorder %v1900, 0.0
    %vm1917 = vcmp.gt.f32.partialorder %v1901, 0.0
    %vm1918 = vcmp.gt.f32.partialorder %v1902, 0.0
    %vm1919 = vcmp.gt.f32.partialorder %v1903, 0.0
    %vm1920 = vcmp.gt.f32.partialorder %v1904, 0.0
    %vm1921 = vcmp.gt.f32.partialorder %v1905, 0.0
    %vm1922 = vcmp.gt.f32.partialorder %v1906, 0.0
    %vm1923 = vcmp.gt.f32.partialorder %v1907, 0.0
    %vm1924 = vcmp.gt.f32.partialorder %v1908, 0.0
    %vm1925 = vcmp.gt.f32.partialorder %v1909, 0.0
    %vm1926 = vcmp.gt.f32.partialorder %v1910, 0.0
    %vm1927 = vcmp.gt.f32.partialorder %v1911, 0.0
    %v1928 = vsel %vm1912, %v1896, 1.0
    %v1929 = vsel %vm1913, %v1897, 1.0
    %v1930 = vsel %vm1914, %v1898, 1.0
    %v1931 = vsel %vm1915, %v1899, 1.0
    %v1932 = vsel %vm1916, %v1900, 1.0
    %v1933 = vsel %vm1917, %v1901, 1.0
    %v1934 = vsel %vm1918, %v1902, 1.0
    %v1935 = vsel %vm1919, %v1903, 1.0
    %v1936 = vsel %vm1920, %v1904, 1.0
    %v1937 = vsel %vm1921, %v1905, 1.0
    %v1938 = vsel %vm1922, %v1906, 1.0
    %v1939 = vsel %vm1923, %v1907, 1.0
    %v1940 = vsel %vm1924, %v1908, 1.0
    %v1941 = vsel %vm1925, %v1909, 1.0
    %v1942 = vsel %vm1926, %v1910, 1.0
    %v1943 = vsel %vm1927, %v1911, 1.0
    %v1944 = vrcp.pop %v1928
    %v1945 = vrcp.pop %v1929
    %v1946 = vrcp.pop %v1930
    %v1947 = vrcp.pop %v1931
    %v1948 = vrcp.pop %v1932
    %v1949 = vrcp.pop %v1933
    %v1950 = vrcp.pop %v1934
    %v1951 = vrcp.pop %v1935
    %v1952 = vrcp.pop %v1936
    %v1953 = vrcp.pop %v1937
    %v1954 = vrcp.pop %v1938
    %v1955 = vrcp.pop %v1939
    %v1956 = vrcp.pop %v1940
    %v1957 = vrcp.pop %v1941
    %v1958 = vrcp.pop %v1942
    %v1959 = vrcp.pop %v1943
    %v1960 = vmul.f32 %v1928, %v1944
    %v1961 = vmul.f32 %v1929, %v1945
    %v1962 = vmul.f32 %v1930, %v1946
    %v1963 = vmul.f32 %v1931, %v1947
    %v1964 = vmul.f32 %v1932, %v1948
    %v1965 = vmul.f32 %v1933, %v1949
    %v1966 = vmul.f32 %v1934, %v1950
    %v1967 = vmul.f32 %v1935, %v1951
    %v1968 = vmul.f32 %v1936, %v1952
    %v1969 = vmul.f32 %v1937, %v1953
    %v1970 = vmul.f32 %v1938, %v1954
    %v1971 = vmul.f32 %v1939, %v1955
    %v1972 = vmul.f32 %v1940, %v1956
    %v1973 = vmul.f32 %v1941, %v1957
    %v1974 = vmul.f32 %v1942, %v1958
    %v1975 = vmul.f32 %v1943, %v1959
    %v1976 = vsub.f32 2.0, %v1960
    %v1977 = vsub.f32 2.0, %v1961
    %v1978 = vsub.f32 2.0, %v1962
    %v1979 = vsub.f32 2.0, %v1963
    %v1980 = vsub.f32 2.0, %v1964
    %v1981 = vsub.f32 2.0, %v1965
    %v1982 = vsub.f32 2.0, %v1966
    %v1983 = vsub.f32 2.0, %v1967
    %v1984 = vsub.f32 2.0, %v1968
    %v1985 = vsub.f32 2.0, %v1969
    %v1986 = vsub.f32 2.0, %v1970
    %v1987 = vsub.f32 2.0, %v1971
    %v1988 = vsub.f32 2.0, %v1972
    %v1989 = vsub.f32 2.0, %v1973
    %v1990 = vsub.f32 2.0, %v1974
    %v1991 = vsub.f32 2.0, %v1975
    %v1992 = vmul.f32 %v1944, %v1976
    %v1993 = vmul.f32 %v1945, %v1977
    %v1994 = vmul.f32 %v1946, %v1978
    %v1995 = vmul.f32 %v1947, %v1979
    %v1996 = vmul.f32 %v1948, %v1980
    %v1997 = vmul.f32 %v1949, %v1981
    %v1998 = vmul.f32 %v1950, %v1982
    %v1999 = vmul.f32 %v1951, %v1983
    %v2000 = vmul.f32 %v1952, %v1984
    %v2001 = vmul.f32 %v1953, %v1985
    %v2002 = vmul.f32 %v1954, %v1986
    %v2003 = vmul.f32 %v1955, %v1987
    %v2004 = vmul.f32 %v1956, %v1988
    %v2005 = vmul.f32 %v1957, %v1989
    %v2006 = vmul.f32 %v1958, %v1990
    %v2007 = vmul.f32 %v1959, %v1991
    %v2008 = vmul.f32 %v1864, %v1992
    %v2009 = vmul.f32 %v1865, %v1993
    %v2010 = vmul.f32 %v1866, %v1994
    %v2011 = vmul.f32 %v1867, %v1995
    %v2012 = vmul.f32 %v1868, %v1996
    %v2013 = vmul.f32 %v1869, %v1997
    %v2014 = vmul.f32 %v1870, %v1998
    %v2015 = vmul.f32 %v1871, %v1999
    %v2016 = vmul.f32 %v1872, %v2000
    %v2017 = vmul.f32 %v1873, %v2001
    %v2018 = vmul.f32 %v1874, %v2002
    %v2019 = vmul.f32 %v1875, %v2003
    %v2020 = vmul.f32 %v1876, %v2004
    %v2021 = vmul.f32 %v1877, %v2005
    %v2022 = vmul.f32 %v1878, %v2006
    %v2023 = vmul.f32 %v1879, %v2007
    %v2024 = vsel %vm1912, %v2008, 0.0
    %v2025 = vsel %vm1913, %v2009, 0.0
    %v2026 = vsel %vm1914, %v2010, 0.0
    %v2027 = vsel %vm1915, %v2011, 0.0
    %v2028 = vsel %vm1916, %v2012, 0.0
    %v2029 = vsel %vm1917, %v2013, 0.0
    %v2030 = vsel %vm1918, %v2014, 0.0
    %v2031 = vsel %vm1919, %v2015, 0.0
    %v2032 = vsel %vm1920, %v2016, 0.0
    %v2033 = vsel %vm1921, %v2017, 0.0
    %v2034 = vsel %vm1922, %v2018, 0.0
    %v2035 = vsel %vm1923, %v2019, 0.0
    %v2036 = vsel %vm1924, %v2020, 0.0
    %v2037 = vsel %vm1925, %v2021, 0.0
    %v2038 = vsel %vm1926, %v2022, 0.0
    %v2039 = vsel %vm1927, %v2023, 0.0
    %v2040 = vmul.f32 %v2024, %v2024
    %v2041 = vmul.f32 %v2025, %v2025
    %v2042 = vmul.f32 %v2026, %v2026
    %v2043 = vmul.f32 %v2027, %v2027
    %v2044 = vmul.f32 %v2028, %v2028
    %v2045 = vmul.f32 %v2029, %v2029
    %v2046 = vmul.f32 %v2030, %v2030
    %v2047 = vmul.f32 %v2031, %v2031
    %v2048 = vmul.f32 %v2032, %v2032
    %v2049 = vmul.f32 %v2033, %v2033
    %v2050 = vmul.f32 %v2034, %v2034
    %v2051 = vmul.f32 %v2035, %v2035
    %v2052 = vmul.f32 %v2036, %v2036
    %v2053 = vmul.f32 %v2037, %v2037
    %v2054 = vmul.f32 %v2038, %v2038
    %v2055 = vmul.f32 %v2039, %v2039
    %v2056 = vmul.f32 %v2040, 0.080537446
    %v2057 = vmul.f32 %v2041, 0.080537446
    %v2058 = vmul.f32 %v2042, 0.080537446
    %v2059 = vmul.f32 %v2043, 0.080537446
    %v2060 = vmul.f32 %v2044, 0.080537446
    %v2061 = vmul.f32 %v2045, 0.080537446
    %v2062 = vmul.f32 %v2046, 0.080537446
    %v2063 = vmul.f32 %v2047, 0.080537446
    %v2064 = vmul.f32 %v2048, 0.080537446
    %v2065 = vmul.f32 %v2049, 0.080537446
    %v2066 = vmul.f32 %v2050, 0.080537446
    %v2067 = vmul.f32 %v2051, 0.080537446
    %v2068 = vmul.f32 %v2052, 0.080537446
    %v2069 = vmul.f32 %v2053, 0.080537446
    %v2070 = vmul.f32 %v2054, 0.080537446
    %v2071 = vmul.f32 %v2055, 0.080537446
    %v2072 = vsub.f32 %v2056, 0.13877685
    %v2073 = vsub.f32 %v2057, 0.13877685
    %v2074 = vsub.f32 %v2058, 0.13877685
    %v2075 = vsub.f32 %v2059, 0.13877685
    %v2076 = vsub.f32 %v2060, 0.13877685
    %v2077 = vsub.f32 %v2061, 0.13877685
    %v2078 = vsub.f32 %v2062, 0.13877685
    %v2079 = vsub.f32 %v2063, 0.13877685
    %v2080 = vsub.f32 %v2064, 0.13877685
    %v2081 = vsub.f32 %v2065, 0.13877685
    %v2082 = vsub.f32 %v2066, 0.13877685
    %v2083 = vsub.f32 %v2067, 0.13877685
    %v2084 = vsub.f32 %v2068, 0.13877685
    %v2085 = vsub.f32 %v2069, 0.13877685
    %v2086 = vsub.f32 %v2070, 0.13877685
    %v2087 = vsub.f32 %v2071, 0.13877685
    %v2088 = vmul.f32 %v2072, %v2040
    %v2089 = vmul.f32 %v2073, %v2041
    %v2090 = vmul.f32 %v2074, %v2042
    %v2091 = vmul.f32 %v2075, %v2043
    %v2092 = vmul.f32 %v2076, %v2044
    %v2093 = vmul.f32 %v2077, %v2045
    %v2094 = vmul.f32 %v2078, %v2046
    %v2095 = vmul.f32 %v2079, %v2047
    %v2096 = vmul.f32 %v2080, %v2048
    %v2097 = vmul.f32 %v2081, %v2049
    %v2098 = vmul.f32 %v2082, %v2050
    %v2099 = vmul.f32 %v2083, %v2051
    %v2100 = vmul.f32 %v2084, %v2052
    %v2101 = vmul.f32 %v2085, %v2053
    %v2102 = vmul.f32 %v2086, %v2054
    %v2103 = vmul.f32 %v2087, %v2055
    %v2104 = vadd.f32 %v2088, 0.19977711
    %v2105 = vadd.f32 %v2089, 0.19977711
    %v2106 = vadd.f32 %v2090, 0.19977711
    %v2107 = vadd.f32 %v2091, 0.19977711
    %v2108 = vadd.f32 %v2092, 0.19977711
    %v2109 = vadd.f32 %v2093, 0.19977711
    %v2110 = vadd.f32 %v2094, 0.19977711
    %v2111 = vadd.f32 %v2095, 0.19977711
    %v2112 = vadd.f32 %v2096, 0.19977711
    %v2113 = vadd.f32 %v2097, 0.19977711
    %v2114 = vadd.f32 %v2098, 0.19977711
    %v2115 = vadd.f32 %v2099, 0.19977711
    %v2116 = vadd.f32 %v2100, 0.19977711
    %v2117 = vadd.f32 %v2101, 0.19977711
    %v2118 = vadd.f32 %v2102, 0.19977711
    %v2119 = vadd.f32 %v2103, 0.19977711
    %v2120 = vmul.f32 %v2104, %v2040
    %v2121 = vmul.f32 %v2105, %v2041
    %v2122 = vmul.f32 %v2106, %v2042
    %v2123 = vmul.f32 %v2107, %v2043
    %v2124 = vmul.f32 %v2108, %v2044
    %v2125 = vmul.f32 %v2109, %v2045
    %v2126 = vmul.f32 %v2110, %v2046
    %v2127 = vmul.f32 %v2111, %v2047
    %v2128 = vmul.f32 %v2112, %v2048
    %v2129 = vmul.f32 %v2113, %v2049
    %v2130 = vmul.f32 %v2114, %v2050
    %v2131 = vmul.f32 %v2115, %v2051
    %v2132 = vmul.f32 %v2116, %v2052
    %v2133 = vmul.f32 %v2117, %v2053
    %v2134 = vmul.f32 %v2118, %v2054
    %v2135 = vmul.f32 %v2119, %v2055
    %v2136 = vsub.f32 %v2120, 0.3333295
    %v2137 = vsub.f32 %v2121, 0.3333295
    %v2138 = vsub.f32 %v2122, 0.3333295
    %v2139 = vsub.f32 %v2123, 0.3333295
    %v2140 = vsub.f32 %v2124, 0.3333295
    %v2141 = vsub.f32 %v2125, 0.3333295
    %v2142 = vsub.f32 %v2126, 0.3333295
    %v2143 = vsub.f32 %v2127, 0.3333295
    %v2144 = vsub.f32 %v2128, 0.3333295
    %v2145 = vsub.f32 %v2129, 0.3333295
    %v2146 = vsub.f32 %v2130, 0.3333295
    %v2147 = vsub.f32 %v2131, 0.3333295
    %v2148 = vsub.f32 %v2132, 0.3333295
    %v2149 = vsub.f32 %v2133, 0.3333295
    %v2150 = vsub.f32 %v2134, 0.3333295
    %v2151 = vsub.f32 %v2135, 0.3333295
    %v2152 = vmul.f32 %v2136, %v2040
    %v2153 = vmul.f32 %v2137, %v2041
    %v2154 = vmul.f32 %v2138, %v2042
    %v2155 = vmul.f32 %v2139, %v2043
    %v2156 = vmul.f32 %v2140, %v2044
    %v2157 = vmul.f32 %v2141, %v2045
    %v2158 = vmul.f32 %v2142, %v2046
    %v2159 = vmul.f32 %v2143, %v2047
    %v2160 = vmul.f32 %v2144, %v2048
    %v2161 = vmul.f32 %v2145, %v2049
    %v2162 = vmul.f32 %v2146, %v2050
    %v2163 = vmul.f32 %v2147, %v2051
    %v2164 = vmul.f32 %v2148, %v2052
    %v2165 = vmul.f32 %v2149, %v2053
    %v2166 = vmul.f32 %v2150, %v2054
    %v2167 = vmul.f32 %v2151, %v2055
    %v2168 = vmul.f32 %v2152, %v2024
    %v2169 = vmul.f32 %v2153, %v2025
    %v2170 = vmul.f32 %v2154, %v2026
    %v2171 = vmul.f32 %v2155, %v2027
    %v2172 = vmul.f32 %v2156, %v2028
    %v2173 = vmul.f32 %v2157, %v2029
    %v2174 = vmul.f32 %v2158, %v2030
    %v2175 = vmul.f32 %v2159, %v2031
    %v2176 = vmul.f32 %v2160, %v2032
    %v2177 = vmul.f32 %v2161, %v2033
    %v2178 = vmul.f32 %v2162, %v2034
    %v2179 = vmul.f32 %v2163, %v2035
    %v2180 = vmul.f32 %v2164, %v2036
    %v2181 = vmul.f32 %v2165, %v2037
    %v2182 = vmul.f32 %v2166, %v2038
    %v2183 = vmul.f32 %v2167, %v2039
    %v2184 = vadd.f32 %v2168, %v2024
    %v2185 = vadd.f32 %v2169, %v2025
    %v2186 = vadd.f32 %v2170, %v2026
    %v2187 = vadd.f32 %v2171, %v2027
    %v2188 = vadd.f32 %v2172, %v2028
    %v2189 = vadd.f32 %v2173, %v2029
    %v2190 = vadd.f32 %v2174, %v2030
    %v2191 = vadd.f32 %v2175, %v2031
    %v2192 = vadd.f32 %v2176, %v2032
    %v2193 = vadd.f32 %v2177, %v2033
    %v2194 = vadd.f32 %v2178, %v2034
    %v2195 = vadd.f32 %v2179, %v2035
    %v2196 = vadd.f32 %v2180, %v2036
    %v2197 = vadd.f32 %v2181, %v2037
    %v2198 = vadd.f32 %v2182, %v2038
    %v2199 = vadd.f32 %v2183, %v2039
    %v2200 = vadd.f32 %v2184, 0.7853982
    %v2201 = vadd.f32 %v2185, 0.7853982
    %v2202 = vadd.f32 %v2186, 0.7853982
    %v2203 = vadd.f32 %v2187, 0.7853982
    %v2204 = vadd.f32 %v2188, 0.7853982
    %v2205 = vadd.f32 %v2189, 0.7853982
    %v2206 = vadd.f32 %v2190, 0.7853982
    %v2207 = vadd.f32 %v2191, 0.7853982
    %v2208 = vadd.f32 %v2192, 0.7853982
    %v2209 = vadd.f32 %v2193, 0.7853982
    %v2210 = vadd.f32 %v2194, 0.7853982
    %v2211 = vadd.f32 %v2195, 0.7853982
    %v2212 = vadd.f32 %v2196, 0.7853982
    %v2213 = vadd.f32 %v2197, 0.7853982
    %v2214 = vadd.f32 %v2198, 0.7853982
    %v2215 = vadd.f32 %v2199, 0.7853982
    %v2216 = vsel %vm1832, %v2200, %v2184
    %v2217 = vsel %vm1833, %v2201, %v2185
    %v2218 = vsel %vm1834, %v2202, %v2186
    %v2219 = vsel %vm1835, %v2203, %v2187
    %v2220 = vsel %vm1836, %v2204, %v2188
    %v2221 = vsel %vm1837, %v2205, %v2189
    %v2222 = vsel %vm1838, %v2206, %v2190
    %v2223 = vsel %vm1839, %v2207, %v2191
    %v2224 = vsel %vm1840, %v2208, %v2192
    %v2225 = vsel %vm1841, %v2209, %v2193
    %v2226 = vsel %vm1842, %v2210, %v2194
    %v2227 = vsel %vm1843, %v2211, %v2195
    %v2228 = vsel %vm1844, %v2212, %v2196
    %v2229 = vsel %vm1845, %v2213, %v2197
    %v2230 = vsel %vm1846, %v2214, %v2198
    %v2231 = vsel %vm1847, %v2215, %v2199
    %vm2232 = vcmp.gt.f32.partialorder %v1768, %v1752
    %vm2233 = vcmp.gt.f32.partialorder %v1769, %v1753
    %vm2234 = vcmp.gt.f32.partialorder %v1770, %v1754
    %vm2235 = vcmp.gt.f32.partialorder %v1771, %v1755
    %vm2236 = vcmp.gt.f32.partialorder %v1772, %v1756
    %vm2237 = vcmp.gt.f32.partialorder %v1773, %v1757
    %vm2238 = vcmp.gt.f32.partialorder %v1774, %v1758
    %vm2239 = vcmp.gt.f32.partialorder %v1775, %v1759
    %vm2240 = vcmp.gt.f32.partialorder %v1776, %v1760
    %vm2241 = vcmp.gt.f32.partialorder %v1777, %v1761
    %vm2242 = vcmp.gt.f32.partialorder %v1778, %v1762
    %vm2243 = vcmp.gt.f32.partialorder %v1779, %v1763
    %vm2244 = vcmp.gt.f32.partialorder %v1780, %v1764
    %vm2245 = vcmp.gt.f32.partialorder %v1781, %v1765
    %vm2246 = vcmp.gt.f32.partialorder %v1782, %v1766
    %vm2247 = vcmp.gt.f32.partialorder %v1783, %v1767
    %v2248 = vsub.f32 1.5707964, %v2216
    %v2249 = vsub.f32 1.5707964, %v2217
    %v2250 = vsub.f32 1.5707964, %v2218
    %v2251 = vsub.f32 1.5707964, %v2219
    %v2252 = vsub.f32 1.5707964, %v2220
    %v2253 = vsub.f32 1.5707964, %v2221
    %v2254 = vsub.f32 1.5707964, %v2222
    %v2255 = vsub.f32 1.5707964, %v2223
    %v2256 = vsub.f32 1.5707964, %v2224
    %v2257 = vsub.f32 1.5707964, %v2225
    %v2258 = vsub.f32 1.5707964, %v2226
    %v2259 = vsub.f32 1.5707964, %v2227
    %v2260 = vsub.f32 1.5707964, %v2228
    %v2261 = vsub.f32 1.5707964, %v2229
    %v2262 = vsub.f32 1.5707964, %v2230
    %v2263 = vsub.f32 1.5707964, %v2231
    %v2264 = vsel %vm2232, %v2248, %v2216
    %v2265 = vsel %vm2233, %v2249, %v2217
    %v2266 = vsel %vm2234, %v2250, %v2218
    %v2267 = vsel %vm2235, %v2251, %v2219
    %v2268 = vsel %vm2236, %v2252, %v2220
    %v2269 = vsel %vm2237, %v2253, %v2221
    %v2270 = vsel %vm2238, %v2254, %v2222
    %v2271 = vsel %vm2239, %v2255, %v2223
    %v2272 = vsel %vm2240, %v2256, %v2224
    %v2273 = vsel %vm2241, %v2257, %v2225
    %v2274 = vsel %vm2242, %v2258, %v2226
    %v2275 = vsel %vm2243, %v2259, %v2227
    %v2276 = vsel %vm2244, %v2260, %v2228
    %v2277 = vsel %vm2245, %v2261, %v2229
    %v2278 = vsel %vm2246, %v2262, %v2230
    %v2279 = vsel %vm2247, %v2263, %v2231
    %vm2280 = vcmp.lt.f32.partialorder %v1720, 0.0
    %vm2281 = vcmp.lt.f32.partialorder %v1721, 0.0
    %vm2282 = vcmp.lt.f32.partialorder %v1722, 0.0
    %vm2283 = vcmp.lt.f32.partialorder %v1723, 0.0
    %vm2284 = vcmp.lt.f32.partialorder %v1724, 0.0
    %vm2285 = vcmp.lt.f32.partialorder %v1725, 0.0
    %vm2286 = vcmp.lt.f32.partialorder %v1726, 0.0
    %vm2287 = vcmp.lt.f32.partialorder %v1727, 0.0
    %vm2288 = vcmp.lt.f32.partialorder %v1728, 0.0
    %vm2289 = vcmp.lt.f32.partialorder %v1729, 0.0
    %vm2290 = vcmp.lt.f32.partialorder %v1730, 0.0
    %vm2291 = vcmp.lt.f32.partialorder %v1731, 0.0
    %vm2292 = vcmp.lt.f32.partialorder %v1732, 0.0
    %vm2293 = vcmp.lt.f32.partialorder %v1733, 0.0
    %vm2294 = vcmp.lt.f32.partialorder %v1734, 0.0
    %vm2295 = vcmp.lt.f32.partialorder %v1735, 0.0
    %v2296 = vsub.f32 3.1415927, %v2264
    %v2297 = vsub.f32 3.1415927, %v2265
    %v2298 = vsub.f32 3.1415927, %v2266
    %v2299 = vsub.f32 3.1415927, %v2267
    %v2300 = vsub.f32 3.1415927, %v2268
    %v2301 = vsub.f32 3.1415927, %v2269
    %v2302 = vsub.f32 3.1415927, %v2270
    %v2303 = vsub.f32 3.1415927, %v2271
    %v2304 = vsub.f32 3.1415927, %v2272
    %v2305 = vsub.f32 3.1415927, %v2273
    %v2306 = vsub.f32 3.1415927, %v2274
    %v2307 = vsub.f32 3.1415927, %v2275
    %v2308 = vsub.f32 3.1415927, %v2276
    %v2309 = vsub.f32 3.1415927, %v2277
    %v2310 = vsub.f32 3.1415927, %v2278
    %v2311 = vsub.f32 3.1415927, %v2279
    %v2312 = vsel %vm2280, %v2296, %v2264
    %v2313 = vsel %vm2281, %v2297, %v2265
    %v2314 = vsel %vm2282, %v2298, %v2266
    %v2315 = vsel %vm2283, %v2299, %v2267
    %v2316 = vsel %vm2284, %v2300, %v2268
    %v2317 = vsel %vm2285, %v2301, %v2269
    %v2318 = vsel %vm2286, %v2302, %v2270
    %v2319 = vsel %vm2287, %v2303, %v2271
    %v2320 = vsel %vm2288, %v2304, %v2272
    %v2321 = vsel %vm2289, %v2305, %v2273
    %v2322 = vsel %vm2290, %v2306, %v2274
    %v2323 = vsel %vm2291, %v2307, %v2275
    %v2324 = vsel %vm2292, %v2308, %v2276
    %v2325 = vsel %vm2293, %v2309, %v2277
    %v2326 = vsel %vm2294, %v2310, %v2278
    %v2327 = vsel %vm2295, %v2311, %v2279
    %vm2328 = vcmp.lt.f32.partialorder %v1736, 0.0
    %vm2329 = vcmp.lt.f32.partialorder %v1737, 0.0
    %vm2330 = vcmp.lt.f32.partialorder %v1738, 0.0
    %vm2331 = vcmp.lt.f32.partialorder %v1739, 0.0
    %vm2332 = vcmp.lt.f32.partialorder %v1740, 0.0
    %vm2333 = vcmp.lt.f32.partialorder %v1741, 0.0
    %vm2334 = vcmp.lt.f32.partialorder %v1742, 0.0
    %vm2335 = vcmp.lt.f32.partialorder %v1743, 0.0
    %vm2336 = vcmp.lt.f32.partialorder %v1744, 0.0
    %vm2337 = vcmp.lt.f32.partialorder %v1745, 0.0
    %vm2338 = vcmp.lt.f32.partialorder %v1746, 0.0
    %vm2339 = vcmp.lt.f32.partialorder %v1747, 0.0
    %vm2340 = vcmp.lt.f32.partialorder %v1748, 0.0
    %vm2341 = vcmp.lt.f32.partialorder %v1749, 0.0
    %vm2342 = vcmp.lt.f32.partialorder %v1750, 0.0
    %vm2343 = vcmp.lt.f32.partialorder %v1751, 0.0
    %v2344 = vsub.f32 0.0, %v2312
    %v2345 = vsub.f32 0.0, %v2313
    %v2346 = vsub.f32 0.0, %v2314
    %v2347 = vsub.f32 0.0, %v2315
    %v2348 = vsub.f32 0.0, %v2316
    %v2349 = vsub.f32 0.0, %v2317
    %v2350 = vsub.f32 0.0, %v2318
    %v2351 = vsub.f32 0.0, %v2319
    %v2352 = vsub.f32 0.0, %v2320
    %v2353 = vsub.f32 0.0, %v2321
    %v2354 = vsub.f32 0.0, %v2322
    %v2355 = vsub.f32 0.0, %v2323
    %v2356 = vsub.f32 0.0, %v2324
    %v2357 = vsub.f32 0.0, %v2325
    %v2358 = vsub.f32 0.0, %v2326
    %v2359 = vsub.f32 0.0, %v2327
    %v2360 = vsel %vm2328, %v2344, %v2312
    %v2361 = vsel %vm2329, %v2345, %v2313
    %v2362 = vsel %vm2330, %v2346, %v2314
    %v2363 = vsel %vm2331, %v2347, %v2315
    %v2364 = vsel %vm2332, %v2348, %v2316
    %v2365 = vsel %vm2333, %v2349, %v2317
    %v2366 = vsel %vm2334, %v2350, %v2318
    %v2367 = vsel %vm2335, %v2351, %v2319
    %v2368 = vsel %vm2336, %v2352, %v2320
    %v2369 = vsel %vm2337, %v2353, %v2321
    %v2370 = vsel %vm2338, %v2354, %v2322
    %v2371 = vsel %vm2339, %v2355, %v2323
    %v2372 = vsel %vm2340, %v2356, %v2324
    %v2373 = vsel %vm2341, %v2357, %v2325
    %v2374 = vsel %vm2342, %v2358, %v2326
    %v2375 = vsel %vm2343, %v2359, %v2327
    %v2376 = vsub.f32 %v1222, %v2360
    %v2377 = vsub.f32 %v1223, %v2361
    %v2378 = vsub.f32 %v1224, %v2362
    %v2379 = vsub.f32 %v1225, %v2363
    %v2380 = vsub.f32 %v1226, %v2364
    %v2381 = vsub.f32 %v1227, %v2365
    %v2382 = vsub.f32 %v1228, %v2366
    %v2383 = vsub.f32 %v1229, %v2367
    %v2384 = vsub.f32 %v1230, %v2368
    %v2385 = vsub.f32 %v1231, %v2369
    %v2386 = vsub.f32 %v1232, %v2370
    %v2387 = vsub.f32 %v1233, %v2371
    %v2388 = vsub.f32 %v1234, %v2372
    %v2389 = vsub.f32 %v1235, %v2373
    %v2390 = vsub.f32 %v1236, %v2374
    %v2391 = vsub.f32 %v1237, %v2375
    %v2392 = vand.u32 2147483647, %v2376
    %v2393 = vand.u32 2147483647, %v2377
    %v2394 = vand.u32 2147483647, %v2378
    %v2395 = vand.u32 2147483647, %v2379
    %v2396 = vand.u32 2147483647, %v2380
    %v2397 = vand.u32 2147483647, %v2381
    %v2398 = vand.u32 2147483647, %v2382
    %v2399 = vand.u32 2147483647, %v2383
    %v2400 = vand.u32 2147483647, %v2384
    %v2401 = vand.u32 2147483647, %v2385
    %v2402 = vand.u32 2147483647, %v2386
    %v2403 = vand.u32 2147483647, %v2387
    %v2404 = vand.u32 2147483647, %v2388
    %v2405 = vand.u32 2147483647, %v2389
    %v2406 = vand.u32 2147483647, %v2390
    %v2407 = vand.u32 2147483647, %v2391
    %v2408 = vld [vmem:[#allocation2] sm:$0xff]
    %v2409 = vadd.f32 %v2392, %v2393
    %v2410 = vadd.f32 %v2409, %v2394
    %v2411 = vadd.f32 %v2410, %v2395
    %v2412 = vadd.f32 %v2411, %v2396
    %v2413 = vadd.f32 %v2412, %v2397
    %v2414 = vadd.f32 %v2413, %v2398
    %v2415 = vadd.f32 %v2414, %v2399
    %v2416 = vadd.f32 %v2415, %v2400
    %v2417 = vadd.f32 %v2416, %v2401
    %v2418 = vadd.f32 %v2417, %v2402
    %v2419 = vadd.f32 %v2418, %v2403
    %v2420 = vadd.f32 %v2419, %v2404
    %v2421 = vadd.f32 %v2420, %v2405
    %v2422 = vadd.f32 %v2421, %v2406
    %v2423 = vadd.f32 %v2422, %v2407
    %v2424 = vadd.f32 %v2408, %v2423
    %2425 = vst [vmem:[#allocation2] sm:$0xff] %v2424
    // Predicated region
    $region22: #{tpu_custom_call.1} parent=1 // pred_check
      %p2426 = pneg %p58
    $region23: #{tpu_custom_call.1} parent=1 // pred_check_branch
      %2428 = sbr.rel (%p2426) target = $region25
    $region24: #{tpu_custom_call.1} parent=1 // pred_region
      %v2429 = vld [vmem:[#allocation2] sm:$0xff]
      %2430 = vst [vmem:[#allocation3] sm:$0xff] %v2429
    $region25: #{tpu_custom_call.1} parent=1 // pred_fallthru
      _
    // Predicated region
    $region26: #{tpu_custom_call.1} parent=1 // pred_check
      _
    $region27: #{tpu_custom_call.1} parent=1 // pred_check_branch
      %2432 = sbr.rel (0) target = $region29
    $region28: #{tpu_custom_call.1} parent=1 // pred_region
      %s2434 = ssub.s32 128, 128
      %2435 = vsyncadd [#allocation4], %s2434
      %s2437 = sshll.u32 [#allocation3], 4
      %s2438 = int_to_ptr.vmem [resolvable:$true] %s2437
      %2440 = dma.vmem_to_hbm [thread:$0]  %s2438, 128, %s4, [#allocation4]
    $region29: #{tpu_custom_call.1} parent=1 // pred_fallthru
      _
    // Predicated region
    $region30: #{tpu_custom_call.1} parent=1 // pred_check
      _
    $region31: #{tpu_custom_call.1} parent=1 // pred_check_branch
      %2442 = sbr.rel (0) target = $region33
    $region32: #{tpu_custom_call.1} parent=1 // pred_region
      %2443 = dma.done [#allocation4], 128
    $region33: #{tpu_custom_call.1} parent=1 // pred_fallthru
      _
    %2444 = vsyncpa [#allocation4], 1

</llo_original>
